<compile_context>
chip_gen: v7x
topology: tpu7x:2x2x1
jax: 0.10.0
libtpu: 0.0.40
codegen_flags: <defaults>
</compile_context>

<pallas_src>
import functools

import jax
import jax.numpy as jnp
from jax import lax
from jax.experimental import pallas as pl
from jax.experimental.pallas import tpu as pltpu


def _round_up(x: int, m: int) -> int:
    return ((x + m - 1) // m) * m


def _pick_time_block(T: int, requested=None) -> int:
    """Largest divisor of T that is <= 32 (or <= requested)."""
    cap = min(T, 32 if requested is None else max(1, int(requested)))
    for cand in range(cap, 0, -1):
        if T % cand == 0:
            return cand
    return 1


def _pick_batch_tile(b_pad: int) -> int:
    """Batch rows per grid tile (>=128 keeps MXU rows busy; split only big batches)."""
    if b_pad <= 256:
        return b_pad
    for cand in (256, 128, 64, 32, 16, 8):
        if b_pad % cand == 0:
            return cand
    return b_pad


def _rnn_kernel(lag_ref, obs_ref, h0_ref, w_ih_ref, b_ih_ref, w_out_ref,
                b_out_ref, out_ref, h_out_ref, xh_ref, *,
                t_blk: int, hidden_size: int, obs_off: int, obs_size: int):
    """One grid step == T_BLK RNN time steps; xh_ref carries packed [h | obs] in VMEM."""
    b_tile, _ = xh_ref.shape
    hid_pad = w_ih_ref.shape[1]
    mxu_dtype = w_ih_ref.dtype     # fp32 by default; bf16 operands keep fp32 accum/carry

    # Load the initial hidden state into the carry at the first time block of
    # each batch tile (zero pad lanes once; they stay exactly zero through time).
    @pl.when(pl.program_id(1) == 0)
    def _():
        xh_ref[...] = jnp.zeros_like(xh_ref)
        xh_ref[:, :hidden_size] = h0_ref[...]

    # Hoisted scalar -> vreg broadcasts (JAX does not CSE broadcast_in_dim).
    lag_v = jnp.full((b_tile, hid_pad), lag_ref[0], jnp.float32)
    oml_v = jnp.full((b_tile, hid_pad), lag_ref[1], jnp.float32)

    def step(i, carry):
        # Place the current observation into its packed lanes of the carry
        # (1 masked sub-lane store per step).
        xh_ref[:, obs_off:obs_off + obs_size] = obs_ref[i]
        xh = xh_ref[...]

        # Fused projection: [h | obs] @ [[W_hh],[W_in]] + (b_in + b_hh) — one MXU pass.
        pre = jnp.dot(xh.astype(mxu_dtype), w_ih_ref[...],
                      preferred_element_type=jnp.float32) + b_ih_ref[...]

        # Leaky-integrator hidden update (fp32 VPU math; fp32 carry).
        rnn_h = lag_v * jnp.maximum(pre, 0.0) + oml_v * xh[:, :hid_pad]
        xh_ref[:, :hid_pad] = rnn_h
        h_out_ref[i] = rnn_h

        # Output projection (zero-padded W_out rows kill any pad-lane garbage).
        out_ref[i] = jnp.dot(rnn_h.astype(mxu_dtype), w_out_ref[...],
                             preferred_element_type=jnp.float32) + b_out_ref[...]
        return carry

    lax.fori_loop(0, t_blk, step, 0, unroll=True)


def basic_rnn_forward_sequence(obs_seq, h0, params, lag_constant, seq_dim=1,
                               t_block=None, weight_dtype=jnp.float32):
    """Runs the full sequence in a single pallas_call.

    obs_seq: time on `seq_dim` (default (B, T, OBS)); pass seq_dim=0 with a
             time-major (T, B, OBS) array to avoid the transpose copy.
    h0:      (B, H).  Returns (out_seq, h_seq) stacked along `seq_dim`.
    """
    w_in, b_in, w_hh, b_hh, w_out, b_out = params
    obs_size, hidden_size = w_in.shape
    output_size = w_out.shape[1]

    obs_tbf = jnp.moveaxis(jnp.asarray(obs_seq, jnp.float32), seq_dim, 0)  # (T, B, OBS)
    T, B, _ = obs_tbf.shape
    h0 = jnp.asarray(h0, jnp.float32)

    # Packed fused-input layout: hidden at lanes [0, H), obs at lanes [obs_off, +OBS).
    obs_off = _round_up(hidden_size, 8)
    k_pad = _round_up(obs_off + obs_size, 128)
    hid_pad = _round_up(hidden_size, 128)
    out_pad = _round_up(output_size, 128)
    b_pad = _round_up(B, 8)
    b_tile = _pick_batch_tile(b_pad)
    t_blk = _pick_time_block(T, t_block)
    num_b, num_t = b_pad // b_tile, T // t_blk

    # Only a cheap batch pad (no-op when B % 8 == 0); obs lanes stay unpadded in HBM.
    if b_pad != B:
        obs_tbf = jnp.pad(obs_tbf, ((0, 0), (0, b_pad - B), (0, 0)))
        h0_p = jnp.pad(h0, ((0, b_pad - B), (0, 0)))
    else:
        h0_p = h0

    # Stacked weights for the fused [h | obs] projection; pre-summed bias (built once).
    w_ih = jnp.zeros((k_pad, hid_pad), jnp.float32)
    w_ih = w_ih.at[:hidden_size, :hidden_size].set(jnp.asarray(w_hh, jnp.float32))
    w_ih = w_ih.at[obs_off:obs_off + obs_size, :hidden_size].set(jnp.asarray(w_in, jnp.float32))
    w_ih = w_ih.astype(weight_dtype)
    b_ih = jnp.zeros((1, hid_pad), jnp.float32).at[:, :hidden_size].set(
        jnp.asarray(b_in, jnp.float32) + jnp.asarray(b_hh, jnp.float32))
    w_out_p = jnp.zeros((hid_pad, out_pad), jnp.float32).at[
        :hidden_size, :output_size].set(jnp.asarray(w_out, jnp.float32)).astype(weight_dtype)
    b_out_p = jnp.zeros((1, out_pad), jnp.float32).at[:, :output_size].set(
        jnp.asarray(b_out, jnp.float32))

    lag = jnp.asarray([lag_constant, 1.0 - lag_constant], jnp.float32)  # SMEM scalars

    kernel = functools.partial(_rnn_kernel, t_blk=t_blk, hidden_size=hidden_size,
                               obs_off=obs_off, obs_size=obs_size)

    # Explicit VMEM budget (resident weights + double-buffered blocks + carry), w/ headroom.
    wbytes = jnp.dtype(weight_dtype).itemsize
    est = (2 * t_blk * b_tile * obs_size * 4
           + 2 * b_tile * hidden_size * 4
           + 2 * (k_pad * hid_pad * wbytes + hid_pad * 4)
           + 2 * (hid_pad * out_pad * wbytes + out_pad * 4)
           + 2 * t_blk * b_tile * out_pad * 4
           + 2 * t_blk * b_tile * hid_pad * 4
           + b_tile * k_pad * 4)
    vmem_limit = int(min(110 * 1024 * 1024, max(32 * 1024 * 1024, 2 * est)))

    grid_spec = pltpu.PrefetchScalarGridSpec(
        num_scalar_prefetch=0,
        grid=(num_b, num_t),
        in_specs=[
            pl.BlockSpec(memory_space=pltpu.MemorySpace.SMEM),                 # lag, 1-lag
            pl.BlockSpec((t_blk, b_tile, obs_size), lambda b, t: (t, b, 0)),   # obs block
            pl.BlockSpec((b_tile, hidden_size), lambda b, t: (b, 0)),          # h0
            pl.BlockSpec((k_pad, hid_pad), lambda b, t: (0, 0)),               # W_ih (resident)
            pl.BlockSpec((1, hid_pad), lambda b, t: (0, 0)),                   # b_ih (resident)
            pl.BlockSpec((hid_pad, out_pad), lambda b, t: (0, 0)),             # W_out (resident)
            pl.BlockSpec((1, out_pad), lambda b, t: (0, 0)),                   # b_out (resident)
        ],
        out_specs=(
            pl.BlockSpec((t_blk, b_tile, out_pad), lambda b, t: (t, b, 0)),    # out_seq
            pl.BlockSpec((t_blk, b_tile, hid_pad), lambda b, t: (t, b, 0)),    # h_seq
        ),
        scratch_shapes=[pltpu.VMEM((b_tile, k_pad), jnp.float32)],
    )

    out_seq_p, h_seq_p = pl.pallas_call(
        kernel,
        out_shape=(
            jax.ShapeDtypeStruct((T, b_pad, out_pad), jnp.float32),
            jax.ShapeDtypeStruct((T, b_pad, hid_pad), jnp.float32),
        ),
        grid_spec=grid_spec,
        compiler_params=pltpu.CompilerParams(
            dimension_semantics=("parallel", "arbitrary"),   # batch || cores, time sequential
            vmem_limit_bytes=vmem_limit),
    )(lag, obs_tbf, h0_p, w_ih, b_ih, w_out_p, b_out_p)

    out_seq = jnp.moveaxis(out_seq_p[:, :B, :output_size], 0, seq_dim)
    h_seq = jnp.moveaxis(h_seq_p[:, :B, :hidden_size], 0, seq_dim)
    return out_seq, h_seq


def basic_rnn_forward(obs, h, params, lag_constant, weight_dtype=jnp.float32):
    """Single-step forward matching BasicRNN.forward: (out.squeeze(), rnn_h.squeeze())."""
    obs = jnp.asarray(obs, jnp.float32)
    h = jnp.asarray(h, jnp.float32)
    if obs.ndim == 1:
        obs = obs[None, :]
    if h.ndim == 1:
        h = h[None, :]
    out_seq, h_seq = basic_rnn_forward_sequence(obs[:, None, :], h, params, lag_constant,
                                                seq_dim=1, weight_dtype=weight_dtype)
    return jnp.squeeze(out_seq[:, 0, :]), jnp.squeeze(h_seq[:, 0, :])


def init_params(key, observation_size, hidden_size, output_size):
    """Deterministic nn.Linear-style init; weights stored (in, out) (transposed)."""
    ks = jax.random.split(key, 6)

    def linear(kw, kb, fan_in, fan_out):
        bound = 1.0 / jnp.sqrt(fan_in)
        w = jax.random.uniform(kw, (fan_in, fan_out), jnp.float32, -bound, bound)
        b = jax.random.uniform(kb, (1, fan_out), jnp.float32, -bound, bound)
        return w, b

    w_in, b_in = linear(ks[0], ks[1], observation_size, hidden_size)
    w_hh, b_hh = linear(ks[2], ks[3], hidden_size, hidden_size)
    w_out, b_out = linear(ks[4], ks[5], hidden_size, output_size)
    return (w_in, b_in, w_hh, b_hh, w_out, b_out)


if __name__ == "__main__":
    observation_size = 16
    hidden_size = 32
    output_size = 8
    batch = 2
    seq_len = 8
    lag_constant = 0.7

    key = jax.random.PRNGKey(0)
    k_obs, k_h, k_par = jax.random.split(key, 3)

    obs_seq = jax.random.normal(k_obs, (batch, seq_len, observation_size), jnp.float32)
    h0 = jax.random.normal(k_h, (batch, hidden_size), jnp.float32)
    params = init_params(k_par, observation_size, hidden_size, output_size)

    # Whole sequence in one pallas_call (time-blocked, weights resident in VMEM).
    out_seq, h_seq = basic_rnn_forward_sequence(obs_seq, h0, params, lag_constant)
    jax.block_until_ready((out_seq, h_seq))

    # Single-step forward (T=1 special case).
    out1, h1 = basic_rnn_forward(obs_seq[:, 0, :], h0, params, lag_constant)
    jax.block_until_ready((out1, h1))

    # Pure-JAX reference of the same math.
    w_in, b_in, w_hh, b_hh, w_out, b_out = params
    h = h0
    outs, hs = [], []
    for t in range(seq_len):
        pre = obs_seq[:, t, :] @ w_in + b_in + h @ w_hh + b_hh
        h = lag_constant * jnp.maximum(pre, 0.0) + (1.0 - lag_constant) * h
        outs.append(h @ w_out + b_out)
        hs.append(h)
    out_ref = jnp.stack(outs, axis=1)
    h_ref = jnp.stack(hs, axis=1)

    assert jnp.allclose(out_seq, out_ref, atol=1e-5), "sequence out mismatch"
    assert jnp.allclose(h_seq, h_ref, atol=1e-5), "sequence hidden mismatch"
    assert jnp.allclose(out1, jnp.squeeze(out_ref[:, 0, :]), atol=1e-5), "step out mismatch"
    assert jnp.allclose(h1, jnp.squeeze(h_ref[:, 0, :]), atol=1e-5), "step hidden mismatch"

    # Optional bf16-weight path (fp32 carry / accumulate) — loose tolerance.
    out_bf, h_bf = basic_rnn_forward_sequence(obs_seq, h0, params, lag_constant,
                                              weight_dtype=jnp.bfloat16)
    jax.block_until_ready((out_bf, h_bf))
    assert jnp.allclose(out_bf, out_ref, atol=1e-1), "bf16 sequence out mismatch"
    assert jnp.allclose(h_bf, h_ref, atol=1e-1), "bf16 sequence hidden mismatch"

    print("KERNEL_OK")
</pallas_src>

<mosaic_0001>
module attributes {stable_mosaic.version = 11 : i64} {
  func.func @_rnn_kernel(%arg0: i32, %arg1: i32, %arg2: memref<2xf32, #tpu.memory_space<smem>>, %arg3: memref<8x8x16xf32, #tpu.memory_space<vmem>>, %arg4: memref<8x32xf32, #tpu.memory_space<vmem>>, %arg5: memref<128x128xf32, #tpu.memory_space<vmem>>, %arg6: memref<1x128xf32, #tpu.memory_space<vmem>>, %arg7: memref<128x128xf32, #tpu.memory_space<vmem>>, %arg8: memref<1x128xf32, #tpu.memory_space<vmem>>, %arg9: memref<8x8x128xf32, #tpu.memory_space<vmem>>, %arg10: memref<8x8x128xf32, #tpu.memory_space<vmem>>, %arg11: memref<8x128xf32, #tpu.memory_space<vmem>>) attributes {dimension_semantics = [#tpu.dimension_semantics<parallel>, #tpu.dimension_semantics<arbitrary>], iteration_bounds = array<i64: 1, 1>, scalar_prefetch = 0 : i64, scratch_operands = 1 : i64, tpu.core_type = #tpu.core_type<tc>, window_params = [{transform_indices = @transform_0, window_bounds = array<i64: 2>}, {transform_indices = @transform_1, window_bounds = array<i64: 8, 8, 16>}, {transform_indices = @transform_2, window_bounds = array<i64: 8, 32>}, {pipeline_mode = #tpu.pipeline_mode<synchronous>, transform_indices = @transform_3, window_bounds = array<i64: 128, 128>}, {pipeline_mode = #tpu.pipeline_mode<synchronous>, transform_indices = @transform_4, window_bounds = array<i64: 1, 128>}, {pipeline_mode = #tpu.pipeline_mode<synchronous>, transform_indices = @transform_5, window_bounds = array<i64: 128, 128>}, {pipeline_mode = #tpu.pipeline_mode<synchronous>, transform_indices = @transform_6, window_bounds = array<i64: 1, 128>}, {transform_indices = @transform_7, window_bounds = array<i64: 8, 8, 128>}, {transform_indices = @transform_8, window_bounds = array<i64: 8, 8, 128>}]} {
    %c0_i32 = arith.constant 0 : i32
    %0 = arith.cmpi eq, %arg1, %c0_i32 : i32
    %1 = arith.extui %0 : i1 to i32
    %c0_i32_0 = arith.constant 0 : i32
    %2 = arith.cmpi ne, %1, %c0_i32_0 : i32
    scf.if %2 {
      %cst_184 = arith.constant 0.000000e+00 : f32
      %239 = vector.broadcast %cst_184 : f32 to vector<8x128xf32>
      %c0_185 = arith.constant 0 : index
      %c0_186 = arith.constant 0 : index
      %240 = vector.load %arg11[%c0_185, %c0_186] : memref<8x128xf32, #tpu.memory_space<vmem>>, vector<8x128xf32>
      tpu.vector_store %arg11[%c0_185, %c0_186], %239 {strides = array<i32>} : memref<8x128xf32, #tpu.memory_space<vmem>>, vector<8x128xf32>,
      %c0_187 = arith.constant 0 : index
      %c0_188 = arith.constant 0 : index
      %241 = vector.load %arg4[%c0_187, %c0_188] : memref<8x32xf32, #tpu.memory_space<vmem>>, vector<8x32xf32>
      %c0_189 = arith.constant 0 : index
      %c0_190 = arith.constant 0 : index
      %242 = vector.load %arg11[%c0_189, %c0_190] : memref<8x128xf32, #tpu.memory_space<vmem>>, vector<8x32xf32>
      tpu.vector_store %arg11[%c0_189, %c0_190], %241 {strides = array<i32>} : memref<8x128xf32, #tpu.memory_space<vmem>>, vector<8x32xf32>,
    } else {
    }
    %c0 = arith.constant 0 : index
    %3 = memref.load %arg2[%c0] : memref<2xf32, #tpu.memory_space<smem>>
    %4 = vector.broadcast %3 : f32 to vector<8x128xf32>
    %c1 = arith.constant 1 : index
    %5 = memref.load %arg2[%c1] : memref<2xf32, #tpu.memory_space<smem>>
    %6 = vector.broadcast %5 : f32 to vector<8x128xf32>
    %c0_i32_1 = arith.constant 0 : i32
    %7 = arith.index_cast %c0_i32_1 : i32 to index
    %c0_2 = arith.constant 0 : index
    %c0_3 = arith.constant 0 : index
    %8 = vector.load %arg3[%7, %c0_2, %c0_3] : memref<8x8x16xf32, #tpu.memory_space<vmem>>, vector<1x8x16xf32>
    %9 = vector.shape_cast %8 : vector<1x8x16xf32> to vector<8x16xf32>
    %c0_4 = arith.constant 0 : index
    %c32 = arith.constant 32 : index
    %10 = vector.load %arg11[%c0_4, %c32] : memref<8x128xf32, #tpu.memory_space<vmem>>, vector<8x16xf32>
    tpu.vector_store %arg11[%c0_4, %c32], %9 {strides = array<i32>} : memref<8x128xf32, #tpu.memory_space<vmem>>, vector<8x16xf32>,
    %c0_5 = arith.constant 0 : index
    %c0_6 = arith.constant 0 : index
    %11 = vector.load %arg11[%c0_5, %c0_6] : memref<8x128xf32, #tpu.memory_space<vmem>>, vector<8x128xf32>
    %c0_7 = arith.constant 0 : index
    %c0_8 = arith.constant 0 : index
    %12 = vector.load %arg5[%c0_7, %c0_8] : memref<128x128xf32, #tpu.memory_space<vmem>>, vector<128x128xf32>
    %cst = arith.constant dense<0.000000e+00> : vector<8x128xf32>
    %13 = tpu.matmul %11, %12, %cst {dimension_numbers = #tpu.dot_dimension_numbers<[1], [0], [0], [1], [0, 0, 1, 1], [], []>} : vector<8x128xf32>, vector<128x128xf32>, vector<8x128xf32> -> vector<8x128xf32>
    %c0_9 = arith.constant 0 : index
    %c0_10 = arith.constant 0 : index
    %14 = vector.load %arg6[%c0_9, %c0_10] : memref<1x128xf32, #tpu.memory_space<vmem>>, vector<1x128xf32>
    %15 = vector.broadcast %14 : vector<1x128xf32> to vector<8x128xf32>
    %16 = arith.addf %13, %15 : vector<8x128xf32>
    %cst_11 = arith.constant 0.000000e+00 : f32
    %17 = vector.broadcast %cst_11 : f32 to vector<8x128xf32>
    %18 = arith.maximumf %16, %17 : vector<8x128xf32>
    %19 = arith.mulf %4, %18 : vector<8x128xf32>
    %20 = arith.mulf %6, %11 : vector<8x128xf32>
    %21 = arith.addf %19, %20 : vector<8x128xf32>
    %c0_12 = arith.constant 0 : index
    %c0_13 = arith.constant 0 : index
    %22 = vector.load %arg11[%c0_12, %c0_13] : memref<8x128xf32, #tpu.memory_space<vmem>>, vector<8x128xf32>
    tpu.vector_store %arg11[%c0_12, %c0_13], %21 {strides = array<i32>} : memref<8x128xf32, #tpu.memory_space<vmem>>, vector<8x128xf32>,
    %23 = arith.index_cast %c0_i32_1 : i32 to index
    %c0_14 = arith.constant 0 : index
    %c0_15 = arith.constant 0 : index
    %24 = vector.load %arg10[%23, %c0_14, %c0_15] : memref<8x8x128xf32, #tpu.memory_space<vmem>>, vector<1x8x128xf32>
    %25 = vector.shape_cast %24 : vector<1x8x128xf32> to vector<8x128xf32>
    %26 = vector.shape_cast %21 : vector<8x128xf32> to vector<1x8x128xf32>
    tpu.vector_store %arg10[%23, %c0_14, %c0_15], %26 {strides = array<i32>} : memref<8x8x128xf32, #tpu.memory_space<vmem>>, vector<1x8x128xf32>,
    %c0_16 = arith.constant 0 : index
    %c0_17 = arith.constant 0 : index
    %27 = vector.load %arg7[%c0_16, %c0_17] : memref<128x128xf32, #tpu.memory_space<vmem>>, vector<128x128xf32>
    %cst_18 = arith.constant dense<0.000000e+00> : vector<8x128xf32>
    %28 = tpu.matmul %21, %27, %cst_18 {dimension_numbers = #tpu.dot_dimension_numbers<[1], [0], [0], [1], [0, 0, 1, 1], [], []>} : vector<8x128xf32>, vector<128x128xf32>, vector<8x128xf32> -> vector<8x128xf32>
    %c0_19 = arith.constant 0 : index
    %c0_20 = arith.constant 0 : index
    %29 = vector.load %arg8[%c0_19, %c0_20] : memref<1x128xf32, #tpu.memory_space<vmem>>, vector<1x128xf32>
    %30 = vector.broadcast %29 : vector<1x128xf32> to vector<8x128xf32>
    %31 = arith.addf %28, %30 : vector<8x128xf32>
    %32 = arith.index_cast %c0_i32_1 : i32 to index
    %c0_21 = arith.constant 0 : index
    %c0_22 = arith.constant 0 : index
    %33 = vector.load %arg9[%32, %c0_21, %c0_22] : memref<8x8x128xf32, #tpu.memory_space<vmem>>, vector<1x8x128xf32>
    %34 = vector.shape_cast %33 : vector<1x8x128xf32> to vector<8x128xf32>
    %35 = vector.shape_cast %31 : vector<8x128xf32> to vector<1x8x128xf32>
    tpu.vector_store %arg9[%32, %c0_21, %c0_22], %35 {strides = array<i32>} : memref<8x8x128xf32, #tpu.memory_space<vmem>>, vector<1x8x128xf32>,
    %c1_i32 = arith.constant 1 : i32
    %36 = arith.index_cast %c1_i32 : i32 to index
    %c0_23 = arith.constant 0 : index
    %c0_24 = arith.constant 0 : index
    %37 = vector.load %arg3[%36, %c0_23, %c0_24] : memref<8x8x16xf32, #tpu.memory_space<vmem>>, vector<1x8x16xf32>
    %38 = vector.shape_cast %37 : vector<1x8x16xf32> to vector<8x16xf32>
    %c0_25 = arith.constant 0 : index
    %c32_26 = arith.constant 32 : index
    %39 = vector.load %arg11[%c0_25, %c32_26] : memref<8x128xf32, #tpu.memory_space<vmem>>, vector<8x16xf32>
    tpu.vector_store %arg11[%c0_25, %c32_26], %38 {strides = array<i32>} : memref<8x128xf32, #tpu.memory_space<vmem>>, vector<8x16xf32>,
    %c0_27 = arith.constant 0 : index
    %c0_28 = arith.constant 0 : index
    %40 = vector.load %arg11[%c0_27, %c0_28] : memref<8x128xf32, #tpu.memory_space<vmem>>, vector<8x128xf32>
    %c0_29 = arith.constant 0 : index
    %c0_30 = arith.constant 0 : index
    %41 = vector.load %arg5[%c0_29, %c0_30] : memref<128x128xf32, #tpu.memory_space<vmem>>, vector<128x128xf32>
    %cst_31 = arith.constant dense<0.000000e+00> : vector<8x128xf32>
    %42 = tpu.matmul %40, %41, %cst_31 {dimension_numbers = #tpu.dot_dimension_numbers<[1], [0], [0], [1], [0, 0, 1, 1], [], []>} : vector<8x128xf32>, vector<128x128xf32>, vector<8x128xf32> -> vector<8x128xf32>
    %c0_32 = arith.constant 0 : index
    %c0_33 = arith.constant 0 : index
    %43 = vector.load %arg6[%c0_32, %c0_33] : memref<1x128xf32, #tpu.memory_space<vmem>>, vector<1x128xf32>
    %44 = vector.broadcast %43 : vector<1x128xf32> to vector<8x128xf32>
    %45 = arith.addf %42, %44 : vector<8x128xf32>
    %cst_34 = arith.constant 0.000000e+00 : f32
    %46 = vector.broadcast %cst_34 : f32 to vector<8x128xf32>
    %47 = arith.maximumf %45, %46 : vector<8x128xf32>
    %48 = arith.mulf %4, %47 : vector<8x128xf32>
    %49 = arith.mulf %6, %40 : vector<8x128xf32>
    %50 = arith.addf %48, %49 : vector<8x128xf32>
    %c0_35 = arith.constant 0 : index
    %c0_36 = arith.constant 0 : index
    %51 = vector.load %arg11[%c0_35, %c0_36] : memref<8x128xf32, #tpu.memory_space<vmem>>, vector<8x128xf32>
    tpu.vector_store %arg11[%c0_35, %c0_36], %50 {strides = array<i32>} : memref<8x128xf32, #tpu.memory_space<vmem>>, vector<8x128xf32>,
    %52 = arith.index_cast %c1_i32 : i32 to index
    %c0_37 = arith.constant 0 : index
    %c0_38 = arith.constant 0 : index
    %53 = vector.load %arg10[%52, %c0_37, %c0_38] : memref<8x8x128xf32, #tpu.memory_space<vmem>>, vector<1x8x128xf32>
    %54 = vector.shape_cast %53 : vector<1x8x128xf32> to vector<8x128xf32>
    %55 = vector.shape_cast %50 : vector<8x128xf32> to vector<1x8x128xf32>
    tpu.vector_store %arg10[%52, %c0_37, %c0_38], %55 {strides = array<i32>} : memref<8x8x128xf32, #tpu.memory_space<vmem>>, vector<1x8x128xf32>,
    %c0_39 = arith.constant 0 : index
    %c0_40 = arith.constant 0 : index
    %56 = vector.load %arg7[%c0_39, %c0_40] : memref<128x128xf32, #tpu.memory_space<vmem>>, vector<128x128xf32>
    %cst_41 = arith.constant dense<0.000000e+00> : vector<8x128xf32>
    %57 = tpu.matmul %50, %56, %cst_41 {dimension_numbers = #tpu.dot_dimension_numbers<[1], [0], [0], [1], [0, 0, 1, 1], [], []>} : vector<8x128xf32>, vector<128x128xf32>, vector<8x128xf32> -> vector<8x128xf32>
    %c0_42 = arith.constant 0 : index
    %c0_43 = arith.constant 0 : index
    %58 = vector.load %arg8[%c0_42, %c0_43] : memref<1x128xf32, #tpu.memory_space<vmem>>, vector<1x128xf32>
    %59 = vector.broadcast %58 : vector<1x128xf32> to vector<8x128xf32>
    %60 = arith.addf %57, %59 : vector<8x128xf32>
    %61 = arith.index_cast %c1_i32 : i32 to index
    %c0_44 = arith.constant 0 : index
    %c0_45 = arith.constant 0 : index
    %62 = vector.load %arg9[%61, %c0_44, %c0_45] : memref<8x8x128xf32, #tpu.memory_space<vmem>>, vector<1x8x128xf32>
    %63 = vector.shape_cast %62 : vector<1x8x128xf32> to vector<8x128xf32>
    %64 = vector.shape_cast %60 : vector<8x128xf32> to vector<1x8x128xf32>
    tpu.vector_store %arg9[%61, %c0_44, %c0_45], %64 {strides = array<i32>} : memref<8x8x128xf32, #tpu.memory_space<vmem>>, vector<1x8x128xf32>,
    %c2_i32 = arith.constant 2 : i32
    %65 = arith.index_cast %c2_i32 : i32 to index
    %c0_46 = arith.constant 0 : index
    %c0_47 = arith.constant 0 : index
    %66 = vector.load %arg3[%65, %c0_46, %c0_47] : memref<8x8x16xf32, #tpu.memory_space<vmem>>, vector<1x8x16xf32>
    %67 = vector.shape_cast %66 : vector<1x8x16xf32> to vector<8x16xf32>
    %c0_48 = arith.constant 0 : index
    %c32_49 = arith.constant 32 : index
    %68 = vector.load %arg11[%c0_48, %c32_49] : memref<8x128xf32, #tpu.memory_space<vmem>>, vector<8x16xf32>
    tpu.vector_store %arg11[%c0_48, %c32_49], %67 {strides = array<i32>} : memref<8x128xf32, #tpu.memory_space<vmem>>, vector<8x16xf32>,
    %c0_50 = arith.constant 0 : index
    %c0_51 = arith.constant 0 : index
    %69 = vector.load %arg11[%c0_50, %c0_51] : memref<8x128xf32, #tpu.memory_space<vmem>>, vector<8x128xf32>
    %c0_52 = arith.constant 0 : index
    %c0_53 = arith.constant 0 : index
    %70 = vector.load %arg5[%c0_52, %c0_53] : memref<128x128xf32, #tpu.memory_space<vmem>>, vector<128x128xf32>
    %cst_54 = arith.constant dense<0.000000e+00> : vector<8x128xf32>
    %71 = tpu.matmul %69, %70, %cst_54 {dimension_numbers = #tpu.dot_dimension_numbers<[1], [0], [0], [1], [0, 0, 1, 1], [], []>} : vector<8x128xf32>, vector<128x128xf32>, vector<8x128xf32> -> vector<8x128xf32>
    %c0_55 = arith.constant 0 : index
    %c0_56 = arith.constant 0 : index
    %72 = vector.load %arg6[%c0_55, %c0_56] : memref<1x128xf32, #tpu.memory_space<vmem>>, vector<1x128xf32>
    %73 = vector.broadcast %72 : vector<1x128xf32> to vector<8x128xf32>
    %74 = arith.addf %71, %73 : vector<8x128xf32>
    %cst_57 = arith.constant 0.000000e+00 : f32
    %75 = vector.broadcast %cst_57 : f32 to vector<8x128xf32>
    %76 = arith.maximumf %74, %75 : vector<8x128xf32>
    %77 = arith.mulf %4, %76 : vector<8x128xf32>
    %78 = arith.mulf %6, %69 : vector<8x128xf32>
    %79 = arith.addf %77, %78 : vector<8x128xf32>
    %c0_58 = arith.constant 0 : index
    %c0_59 = arith.constant 0 : index
    %80 = vector.load %arg11[%c0_58, %c0_59] : memref<8x128xf32, #tpu.memory_space<vmem>>, vector<8x128xf32>
    tpu.vector_store %arg11[%c0_58, %c0_59], %79 {strides = array<i32>} : memref<8x128xf32, #tpu.memory_space<vmem>>, vector<8x128xf32>,
    %81 = arith.index_cast %c2_i32 : i32 to index
    %c0_60 = arith.constant 0 : index
    %c0_61 = arith.constant 0 : index
    %82 = vector.load %arg10[%81, %c0_60, %c0_61] : memref<8x8x128xf32, #tpu.memory_space<vmem>>, vector<1x8x128xf32>
    %83 = vector.shape_cast %82 : vector<1x8x128xf32> to vector<8x128xf32>
    %84 = vector.shape_cast %79 : vector<8x128xf32> to vector<1x8x128xf32>
    tpu.vector_store %arg10[%81, %c0_60, %c0_61], %84 {strides = array<i32>} : memref<8x8x128xf32, #tpu.memory_space<vmem>>, vector<1x8x128xf32>,
    %c0_62 = arith.constant 0 : index
    %c0_63 = arith.constant 0 : index
    %85 = vector.load %arg7[%c0_62, %c0_63] : memref<128x128xf32, #tpu.memory_space<vmem>>, vector<128x128xf32>
    %cst_64 = arith.constant dense<0.000000e+00> : vector<8x128xf32>
    %86 = tpu.matmul %79, %85, %cst_64 {dimension_numbers = #tpu.dot_dimension_numbers<[1], [0], [0], [1], [0, 0, 1, 1], [], []>} : vector<8x128xf32>, vector<128x128xf32>, vector<8x128xf32> -> vector<8x128xf32>
    %c0_65 = arith.constant 0 : index
    %c0_66 = arith.constant 0 : index
    %87 = vector.load %arg8[%c0_65, %c0_66] : memref<1x128xf32, #tpu.memory_space<vmem>>, vector<1x128xf32>
    %88 = vector.broadcast %87 : vector<1x128xf32> to vector<8x128xf32>
    %89 = arith.addf %86, %88 : vector<8x128xf32>
    %90 = arith.index_cast %c2_i32 : i32 to index
    %c0_67 = arith.constant 0 : index
    %c0_68 = arith.constant 0 : index
    %91 = vector.load %arg9[%90, %c0_67, %c0_68] : memref<8x8x128xf32, #tpu.memory_space<vmem>>, vector<1x8x128xf32>
    %92 = vector.shape_cast %91 : vector<1x8x128xf32> to vector<8x128xf32>
    %93 = vector.shape_cast %89 : vector<8x128xf32> to vector<1x8x128xf32>
    tpu.vector_store %arg9[%90, %c0_67, %c0_68], %93 {strides = array<i32>} : memref<8x8x128xf32, #tpu.memory_space<vmem>>, vector<1x8x128xf32>,
    %c3_i32 = arith.constant 3 : i32
    %94 = arith.index_cast %c3_i32 : i32 to index
    %c0_69 = arith.constant 0 : index
    %c0_70 = arith.constant 0 : index
    %95 = vector.load %arg3[%94, %c0_69, %c0_70] : memref<8x8x16xf32, #tpu.memory_space<vmem>>, vector<1x8x16xf32>
    %96 = vector.shape_cast %95 : vector<1x8x16xf32> to vector<8x16xf32>
    %c0_71 = arith.constant 0 : index
    %c32_72 = arith.constant 32 : index
    %97 = vector.load %arg11[%c0_71, %c32_72] : memref<8x128xf32, #tpu.memory_space<vmem>>, vector<8x16xf32>
    tpu.vector_store %arg11[%c0_71, %c32_72], %96 {strides = array<i32>} : memref<8x128xf32, #tpu.memory_space<vmem>>, vector<8x16xf32>,
    %c0_73 = arith.constant 0 : index
    %c0_74 = arith.constant 0 : index
    %98 = vector.load %arg11[%c0_73, %c0_74] : memref<8x128xf32, #tpu.memory_space<vmem>>, vector<8x128xf32>
    %c0_75 = arith.constant 0 : index
    %c0_76 = arith.constant 0 : index
    %99 = vector.load %arg5[%c0_75, %c0_76] : memref<128x128xf32, #tpu.memory_space<vmem>>, vector<128x128xf32>
    %cst_77 = arith.constant dense<0.000000e+00> : vector<8x128xf32>
    %100 = tpu.matmul %98, %99, %cst_77 {dimension_numbers = #tpu.dot_dimension_numbers<[1], [0], [0], [1], [0, 0, 1, 1], [], []>} : vector<8x128xf32>, vector<128x128xf32>, vector<8x128xf32> -> vector<8x128xf32>
    %c0_78 = arith.constant 0 : index
    %c0_79 = arith.constant 0 : index
    %101 = vector.load %arg6[%c0_78, %c0_79] : memref<1x128xf32, #tpu.memory_space<vmem>>, vector<1x128xf32>
    %102 = vector.broadcast %101 : vector<1x128xf32> to vector<8x128xf32>
    %103 = arith.addf %100, %102 : vector<8x128xf32>
    %cst_80 = arith.constant 0.000000e+00 : f32
    %104 = vector.broadcast %cst_80 : f32 to vector<8x128xf32>
    %105 = arith.maximumf %103, %104 : vector<8x128xf32>
    %106 = arith.mulf %4, %105 : vector<8x128xf32>
    %107 = arith.mulf %6, %98 : vector<8x128xf32>
    %108 = arith.addf %106, %107 : vector<8x128xf32>
    %c0_81 = arith.constant 0 : index
    %c0_82 = arith.constant 0 : index
    %109 = vector.load %arg11[%c0_81, %c0_82] : memref<8x128xf32, #tpu.memory_space<vmem>>, vector<8x128xf32>
    tpu.vector_store %arg11[%c0_81, %c0_82], %108 {strides = array<i32>} : memref<8x128xf32, #tpu.memory_space<vmem>>, vector<8x128xf32>,
    %110 = arith.index_cast %c3_i32 : i32 to index
    %c0_83 = arith.constant 0 : index
    %c0_84 = arith.constant 0 : index
    %111 = vector.load %arg10[%110, %c0_83, %c0_84] : memref<8x8x128xf32, #tpu.memory_space<vmem>>, vector<1x8x128xf32>
    %112 = vector.shape_cast %111 : vector<1x8x128xf32> to vector<8x128xf32>
    %113 = vector.shape_cast %108 : vector<8x128xf32> to vector<1x8x128xf32>
    tpu.vector_store %arg10[%110, %c0_83, %c0_84], %113 {strides = array<i32>} : memref<8x8x128xf32, #tpu.memory_space<vmem>>, vector<1x8x128xf32>,
    %c0_85 = arith.constant 0 : index
    %c0_86 = arith.constant 0 : index
    %114 = vector.load %arg7[%c0_85, %c0_86] : memref<128x128xf32, #tpu.memory_space<vmem>>, vector<128x128xf32>
    %cst_87 = arith.constant dense<0.000000e+00> : vector<8x128xf32>
    %115 = tpu.matmul %108, %114, %cst_87 {dimension_numbers = #tpu.dot_dimension_numbers<[1], [0], [0], [1], [0, 0, 1, 1], [], []>} : vector<8x128xf32>, vector<128x128xf32>, vector<8x128xf32> -> vector<8x128xf32>
    %c0_88 = arith.constant 0 : index
    %c0_89 = arith.constant 0 : index
    %116 = vector.load %arg8[%c0_88, %c0_89] : memref<1x128xf32, #tpu.memory_space<vmem>>, vector<1x128xf32>
    %117 = vector.broadcast %116 : vector<1x128xf32> to vector<8x128xf32>
    %118 = arith.addf %115, %117 : vector<8x128xf32>
    %119 = arith.index_cast %c3_i32 : i32 to index
    %c0_90 = arith.constant 0 : index
    %c0_91 = arith.constant 0 : index
    %120 = vector.load %arg9[%119, %c0_90, %c0_91] : memref<8x8x128xf32, #tpu.memory_space<vmem>>, vector<1x8x128xf32>
    %121 = vector.shape_cast %120 : vector<1x8x128xf32> to vector<8x128xf32>
    %122 = vector.shape_cast %118 : vector<8x128xf32> to vector<1x8x128xf32>
    tpu.vector_store %arg9[%119, %c0_90, %c0_91], %122 {strides = array<i32>} : memref<8x8x128xf32, #tpu.memory_space<vmem>>, vector<1x8x128xf32>,
    %c4_i32 = arith.constant 4 : i32
    %123 = arith.index_cast %c4_i32 : i32 to index
    %c0_92 = arith.constant 0 : index
    %c0_93 = arith.constant 0 : index
    %124 = vector.load %arg3[%123, %c0_92, %c0_93] : memref<8x8x16xf32, #tpu.memory_space<vmem>>, vector<1x8x16xf32>
    %125 = vector.shape_cast %124 : vector<1x8x16xf32> to vector<8x16xf32>
    %c0_94 = arith.constant 0 : index
    %c32_95 = arith.constant 32 : index
    %126 = vector.load %arg11[%c0_94, %c32_95] : memref<8x128xf32, #tpu.memory_space<vmem>>, vector<8x16xf32>
    tpu.vector_store %arg11[%c0_94, %c32_95], %125 {strides = array<i32>} : memref<8x128xf32, #tpu.memory_space<vmem>>, vector<8x16xf32>,
    %c0_96 = arith.constant 0 : index
    %c0_97 = arith.constant 0 : index
    %127 = vector.load %arg11[%c0_96, %c0_97] : memref<8x128xf32, #tpu.memory_space<vmem>>, vector<8x128xf32>
    %c0_98 = arith.constant 0 : index
    %c0_99 = arith.constant 0 : index
    %128 = vector.load %arg5[%c0_98, %c0_99] : memref<128x128xf32, #tpu.memory_space<vmem>>, vector<128x128xf32>
    %cst_100 = arith.constant dense<0.000000e+00> : vector<8x128xf32>
    %129 = tpu.matmul %127, %128, %cst_100 {dimension_numbers = #tpu.dot_dimension_numbers<[1], [0], [0], [1], [0, 0, 1, 1], [], []>} : vector<8x128xf32>, vector<128x128xf32>, vector<8x128xf32> -> vector<8x128xf32>
    %c0_101 = arith.constant 0 : index
    %c0_102 = arith.constant 0 : index
    %130 = vector.load %arg6[%c0_101, %c0_102] : memref<1x128xf32, #tpu.memory_space<vmem>>, vector<1x128xf32>
    %131 = vector.broadcast %130 : vector<1x128xf32> to vector<8x128xf32>
    %132 = arith.addf %129, %131 : vector<8x128xf32>
    %cst_103 = arith.constant 0.000000e+00 : f32
    %133 = vector.broadcast %cst_103 : f32 to vector<8x128xf32>
    %134 = arith.maximumf %132, %133 : vector<8x128xf32>
    %135 = arith.mulf %4, %134 : vector<8x128xf32>
    %136 = arith.mulf %6, %127 : vector<8x128xf32>
    %137 = arith.addf %135, %136 : vector<8x128xf32>
    %c0_104 = arith.constant 0 : index
    %c0_105 = arith.constant 0 : index
    %138 = vector.load %arg11[%c0_104, %c0_105] : memref<8x128xf32, #tpu.memory_space<vmem>>, vector<8x128xf32>
    tpu.vector_store %arg11[%c0_104, %c0_105], %137 {strides = array<i32>} : memref<8x128xf32, #tpu.memory_space<vmem>>, vector<8x128xf32>,
    %139 = arith.index_cast %c4_i32 : i32 to index
    %c0_106 = arith.constant 0 : index
    %c0_107 = arith.constant 0 : index
    %140 = vector.load %arg10[%139, %c0_106, %c0_107] : memref<8x8x128xf32, #tpu.memory_space<vmem>>, vector<1x8x128xf32>
    %141 = vector.shape_cast %140 : vector<1x8x128xf32> to vector<8x128xf32>
    %142 = vector.shape_cast %137 : vector<8x128xf32> to vector<1x8x128xf32>
    tpu.vector_store %arg10[%139, %c0_106, %c0_107], %142 {strides = array<i32>} : memref<8x8x128xf32, #tpu.memory_space<vmem>>, vector<1x8x128xf32>,
    %c0_108 = arith.constant 0 : index
    %c0_109 = arith.constant 0 : index
    %143 = vector.load %arg7[%c0_108, %c0_109] : memref<128x128xf32, #tpu.memory_space<vmem>>, vector<128x128xf32>
    %cst_110 = arith.constant dense<0.000000e+00> : vector<8x128xf32>
    %144 = tpu.matmul %137, %143, %cst_110 {dimension_numbers = #tpu.dot_dimension_numbers<[1], [0], [0], [1], [0, 0, 1, 1], [], []>} : vector<8x128xf32>, vector<128x128xf32>, vector<8x128xf32> -> vector<8x128xf32>
    %c0_111 = arith.constant 0 : index
    %c0_112 = arith.constant 0 : index
    %145 = vector.load %arg8[%c0_111, %c0_112] : memref<1x128xf32, #tpu.memory_space<vmem>>, vector<1x128xf32>
    %146 = vector.broadcast %145 : vector<1x128xf32> to vector<8x128xf32>
    %147 = arith.addf %144, %146 : vector<8x128xf32>
    %148 = arith.index_cast %c4_i32 : i32 to index
    %c0_113 = arith.constant 0 : index
    %c0_114 = arith.constant 0 : index
    %149 = vector.load %arg9[%148, %c0_113, %c0_114] : memref<8x8x128xf32, #tpu.memory_space<vmem>>, vector<1x8x128xf32>
    %150 = vector.shape_cast %149 : vector<1x8x128xf32> to vector<8x128xf32>
    %151 = vector.shape_cast %147 : vector<8x128xf32> to vector<1x8x128xf32>
    tpu.vector_store %arg9[%148, %c0_113, %c0_114], %151 {strides = array<i32>} : memref<8x8x128xf32, #tpu.memory_space<vmem>>, vector<1x8x128xf32>,
    %c5_i32 = arith.constant 5 : i32
    %152 = arith.index_cast %c5_i32 : i32 to index
    %c0_115 = arith.constant 0 : index
    %c0_116 = arith.constant 0 : index
    %153 = vector.load %arg3[%152, %c0_115, %c0_116] : memref<8x8x16xf32, #tpu.memory_space<vmem>>, vector<1x8x16xf32>
    %154 = vector.shape_cast %153 : vector<1x8x16xf32> to vector<8x16xf32>
    %c0_117 = arith.constant 0 : index
    %c32_118 = arith.constant 32 : index
    %155 = vector.load %arg11[%c0_117, %c32_118] : memref<8x128xf32, #tpu.memory_space<vmem>>, vector<8x16xf32>
    tpu.vector_store %arg11[%c0_117, %c32_118], %154 {strides = array<i32>} : memref<8x128xf32, #tpu.memory_space<vmem>>, vector<8x16xf32>,
    %c0_119 = arith.constant 0 : index
    %c0_120 = arith.constant 0 : index
    %156 = vector.load %arg11[%c0_119, %c0_120] : memref<8x128xf32, #tpu.memory_space<vmem>>, vector<8x128xf32>
    %c0_121 = arith.constant 0 : index
    %c0_122 = arith.constant 0 : index
    %157 = vector.load %arg5[%c0_121, %c0_122] : memref<128x128xf32, #tpu.memory_space<vmem>>, vector<128x128xf32>
    %cst_123 = arith.constant dense<0.000000e+00> : vector<8x128xf32>
    %158 = tpu.matmul %156, %157, %cst_123 {dimension_numbers = #tpu.dot_dimension_numbers<[1], [0], [0], [1], [0, 0, 1, 1], [], []>} : vector<8x128xf32>, vector<128x128xf32>, vector<8x128xf32> -> vector<8x128xf32>
    %c0_124 = arith.constant 0 : index
    %c0_125 = arith.constant 0 : index
    %159 = vector.load %arg6[%c0_124, %c0_125] : memref<1x128xf32, #tpu.memory_space<vmem>>, vector<1x128xf32>
    %160 = vector.broadcast %159 : vector<1x128xf32> to vector<8x128xf32>
    %161 = arith.addf %158, %160 : vector<8x128xf32>
    %cst_126 = arith.constant 0.000000e+00 : f32
    %162 = vector.broadcast %cst_126 : f32 to vector<8x128xf32>
    %163 = arith.maximumf %161, %162 : vector<8x128xf32>
    %164 = arith.mulf %4, %163 : vector<8x128xf32>
    %165 = arith.mulf %6, %156 : vector<8x128xf32>
    %166 = arith.addf %164, %165 : vector<8x128xf32>
    %c0_127 = arith.constant 0 : index
    %c0_128 = arith.constant 0 : index
    %167 = vector.load %arg11[%c0_127, %c0_128] : memref<8x128xf32, #tpu.memory_space<vmem>>, vector<8x128xf32>
    tpu.vector_store %arg11[%c0_127, %c0_128], %166 {strides = array<i32>} : memref<8x128xf32, #tpu.memory_space<vmem>>, vector<8x128xf32>,
    %168 = arith.index_cast %c5_i32 : i32 to index
    %c0_129 = arith.constant 0 : index
    %c0_130 = arith.constant 0 : index
    %169 = vector.load %arg10[%168, %c0_129, %c0_130] : memref<8x8x128xf32, #tpu.memory_space<vmem>>, vector<1x8x128xf32>
    %170 = vector.shape_cast %169 : vector<1x8x128xf32> to vector<8x128xf32>
    %171 = vector.shape_cast %166 : vector<8x128xf32> to vector<1x8x128xf32>
    tpu.vector_store %arg10[%168, %c0_129, %c0_130], %171 {strides = array<i32>} : memref<8x8x128xf32, #tpu.memory_space<vmem>>, vector<1x8x128xf32>,
    %c0_131 = arith.constant 0 : index
    %c0_132 = arith.constant 0 : index
    %172 = vector.load %arg7[%c0_131, %c0_132] : memref<128x128xf32, #tpu.memory_space<vmem>>, vector<128x128xf32>
    %cst_133 = arith.constant dense<0.000000e+00> : vector<8x128xf32>
    %173 = tpu.matmul %166, %172, %cst_133 {dimension_numbers = #tpu.dot_dimension_numbers<[1], [0], [0], [1], [0, 0, 1, 1], [], []>} : vector<8x128xf32>, vector<128x128xf32>, vector<8x128xf32> -> vector<8x128xf32>
    %c0_134 = arith.constant 0 : index
    %c0_135 = arith.constant 0 : index
    %174 = vector.load %arg8[%c0_134, %c0_135] : memref<1x128xf32, #tpu.memory_space<vmem>>, vector<1x128xf32>
    %175 = vector.broadcast %174 : vector<1x128xf32> to vector<8x128xf32>
    %176 = arith.addf %173, %175 : vector<8x128xf32>
    %177 = arith.index_cast %c5_i32 : i32 to index
    %c0_136 = arith.constant 0 : index
    %c0_137 = arith.constant 0 : index
    %178 = vector.load %arg9[%177, %c0_136, %c0_137] : memref<8x8x128xf32, #tpu.memory_space<vmem>>, vector<1x8x128xf32>
    %179 = vector.shape_cast %178 : vector<1x8x128xf32> to vector<8x128xf32>
    %180 = vector.shape_cast %176 : vector<8x128xf32> to vector<1x8x128xf32>
    tpu.vector_store %arg9[%177, %c0_136, %c0_137], %180 {strides = array<i32>} : memref<8x8x128xf32, #tpu.memory_space<vmem>>, vector<1x8x128xf32>,
    %c6_i32 = arith.constant 6 : i32
    %181 = arith.index_cast %c6_i32 : i32 to index
    %c0_138 = arith.constant 0 : index
    %c0_139 = arith.constant 0 : index
    %182 = vector.load %arg3[%181, %c0_138, %c0_139] : memref<8x8x16xf32, #tpu.memory_space<vmem>>, vector<1x8x16xf32>
    %183 = vector.shape_cast %182 : vector<1x8x16xf32> to vector<8x16xf32>
    %c0_140 = arith.constant 0 : index
    %c32_141 = arith.constant 32 : index
    %184 = vector.load %arg11[%c0_140, %c32_141] : memref<8x128xf32, #tpu.memory_space<vmem>>, vector<8x16xf32>
    tpu.vector_store %arg11[%c0_140, %c32_141], %183 {strides = array<i32>} : memref<8x128xf32, #tpu.memory_space<vmem>>, vector<8x16xf32>,
    %c0_142 = arith.constant 0 : index
    %c0_143 = arith.constant 0 : index
    %185 = vector.load %arg11[%c0_142, %c0_143] : memref<8x128xf32, #tpu.memory_space<vmem>>, vector<8x128xf32>
    %c0_144 = arith.constant 0 : index
    %c0_145 = arith.constant 0 : index
    %186 = vector.load %arg5[%c0_144, %c0_145] : memref<128x128xf32, #tpu.memory_space<vmem>>, vector<128x128xf32>
    %cst_146 = arith.constant dense<0.000000e+00> : vector<8x128xf32>
    %187 = tpu.matmul %185, %186, %cst_146 {dimension_numbers = #tpu.dot_dimension_numbers<[1], [0], [0], [1], [0, 0, 1, 1], [], []>} : vector<8x128xf32>, vector<128x128xf32>, vector<8x128xf32> -> vector<8x128xf32>
    %c0_147 = arith.constant 0 : index
    %c0_148 = arith.constant 0 : index
    %188 = vector.load %arg6[%c0_147, %c0_148] : memref<1x128xf32, #tpu.memory_space<vmem>>, vector<1x128xf32>
    %189 = vector.broadcast %188 : vector<1x128xf32> to vector<8x128xf32>
    %190 = arith.addf %187, %189 : vector<8x128xf32>
    %cst_149 = arith.constant 0.000000e+00 : f32
    %191 = vector.broadcast %cst_149 : f32 to vector<8x128xf32>
    %192 = arith.maximumf %190, %191 : vector<8x128xf32>
    %193 = arith.mulf %4, %192 : vector<8x128xf32>
    %194 = arith.mulf %6, %185 : vector<8x128xf32>
    %195 = arith.addf %193, %194 : vector<8x128xf32>
    %c0_150 = arith.constant 0 : index
    %c0_151 = arith.constant 0 : index
    %196 = vector.load %arg11[%c0_150, %c0_151] : memref<8x128xf32, #tpu.memory_space<vmem>>, vector<8x128xf32>
    tpu.vector_store %arg11[%c0_150, %c0_151], %195 {strides = array<i32>} : memref<8x128xf32, #tpu.memory_space<vmem>>, vector<8x128xf32>,
    %197 = arith.index_cast %c6_i32 : i32 to index
    %c0_152 = arith.constant 0 : index
    %c0_153 = arith.constant 0 : index
    %198 = vector.load %arg10[%197, %c0_152, %c0_153] : memref<8x8x128xf32, #tpu.memory_space<vmem>>, vector<1x8x128xf32>
    %199 = vector.shape_cast %198 : vector<1x8x128xf32> to vector<8x128xf32>
    %200 = vector.shape_cast %195 : vector<8x128xf32> to vector<1x8x128xf32>
    tpu.vector_store %arg10[%197, %c0_152, %c0_153], %200 {strides = array<i32>} : memref<8x8x128xf32, #tpu.memory_space<vmem>>, vector<1x8x128xf32>,
    %c0_154 = arith.constant 0 : index
    %c0_155 = arith.constant 0 : index
    %201 = vector.load %arg7[%c0_154, %c0_155] : memref<128x128xf32, #tpu.memory_space<vmem>>, vector<128x128xf32>
    %cst_156 = arith.constant dense<0.000000e+00> : vector<8x128xf32>
    %202 = tpu.matmul %195, %201, %cst_156 {dimension_numbers = #tpu.dot_dimension_numbers<[1], [0], [0], [1], [0, 0, 1, 1], [], []>} : vector<8x128xf32>, vector<128x128xf32>, vector<8x128xf32> -> vector<8x128xf32>
    %c0_157 = arith.constant 0 : index
    %c0_158 = arith.constant 0 : index
    %203 = vector.load %arg8[%c0_157, %c0_158] : memref<1x128xf32, #tpu.memory_space<vmem>>, vector<1x128xf32>
    %204 = vector.broadcast %203 : vector<1x128xf32> to vector<8x128xf32>
    %205 = arith.addf %202, %204 : vector<8x128xf32>
    %206 = arith.index_cast %c6_i32 : i32 to index
    %c0_159 = arith.constant 0 : index
    %c0_160 = arith.constant 0 : index
    %207 = vector.load %arg9[%206, %c0_159, %c0_160] : memref<8x8x128xf32, #tpu.memory_space<vmem>>, vector<1x8x128xf32>
    %208 = vector.shape_cast %207 : vector<1x8x128xf32> to vector<8x128xf32>
    %209 = vector.shape_cast %205 : vector<8x128xf32> to vector<1x8x128xf32>
    tpu.vector_store %arg9[%206, %c0_159, %c0_160], %209 {strides = array<i32>} : memref<8x8x128xf32, #tpu.memory_space<vmem>>, vector<1x8x128xf32>,
    %c7_i32 = arith.constant 7 : i32
    %210 = arith.index_cast %c7_i32 : i32 to index
    %c0_161 = arith.constant 0 : index
    %c0_162 = arith.constant 0 : index
    %211 = vector.load %arg3[%210, %c0_161, %c0_162] : memref<8x8x16xf32, #tpu.memory_space<vmem>>, vector<1x8x16xf32>
    %212 = vector.shape_cast %211 : vector<1x8x16xf32> to vector<8x16xf32>
    %c0_163 = arith.constant 0 : index
    %c32_164 = arith.constant 32 : index
    %213 = vector.load %arg11[%c0_163, %c32_164] : memref<8x128xf32, #tpu.memory_space<vmem>>, vector<8x16xf32>
    tpu.vector_store %arg11[%c0_163, %c32_164], %212 {strides = array<i32>} : memref<8x128xf32, #tpu.memory_space<vmem>>, vector<8x16xf32>,
    %c0_165 = arith.constant 0 : index
    %c0_166 = arith.constant 0 : index
    %214 = vector.load %arg11[%c0_165, %c0_166] : memref<8x128xf32, #tpu.memory_space<vmem>>, vector<8x128xf32>
    %c0_167 = arith.constant 0 : index
    %c0_168 = arith.constant 0 : index
    %215 = vector.load %arg5[%c0_167, %c0_168] : memref<128x128xf32, #tpu.memory_space<vmem>>, vector<128x128xf32>
    %cst_169 = arith.constant dense<0.000000e+00> : vector<8x128xf32>
    %216 = tpu.matmul %214, %215, %cst_169 {dimension_numbers = #tpu.dot_dimension_numbers<[1], [0], [0], [1], [0, 0, 1, 1], [], []>} : vector<8x128xf32>, vector<128x128xf32>, vector<8x128xf32> -> vector<8x128xf32>
    %c0_170 = arith.constant 0 : index
    %c0_171 = arith.constant 0 : index
    %217 = vector.load %arg6[%c0_170, %c0_171] : memref<1x128xf32, #tpu.memory_space<vmem>>, vector<1x128xf32>
    %218 = vector.broadcast %217 : vector<1x128xf32> to vector<8x128xf32>
    %219 = arith.addf %216, %218 : vector<8x128xf32>
    %cst_172 = arith.constant 0.000000e+00 : f32
    %220 = vector.broadcast %cst_172 : f32 to vector<8x128xf32>
    %221 = arith.maximumf %219, %220 : vector<8x128xf32>
    %222 = arith.mulf %4, %221 : vector<8x128xf32>
    %223 = arith.mulf %6, %214 : vector<8x128xf32>
    %224 = arith.addf %222, %223 : vector<8x128xf32>
    %c0_173 = arith.constant 0 : index
    %c0_174 = arith.constant 0 : index
    %225 = vector.load %arg11[%c0_173, %c0_174] : memref<8x128xf32, #tpu.memory_space<vmem>>, vector<8x128xf32>
    tpu.vector_store %arg11[%c0_173, %c0_174], %224 {strides = array<i32>} : memref<8x128xf32, #tpu.memory_space<vmem>>, vector<8x128xf32>,
    %226 = arith.index_cast %c7_i32 : i32 to index
    %c0_175 = arith.constant 0 : index
    %c0_176 = arith.constant 0 : index
    %227 = vector.load %arg10[%226, %c0_175, %c0_176] : memref<8x8x128xf32, #tpu.memory_space<vmem>>, vector<1x8x128xf32>
    %228 = vector.shape_cast %227 : vector<1x8x128xf32> to vector<8x128xf32>
    %229 = vector.shape_cast %224 : vector<8x128xf32> to vector<1x8x128xf32>
    tpu.vector_store %arg10[%226, %c0_175, %c0_176], %229 {strides = array<i32>} : memref<8x8x128xf32, #tpu.memory_space<vmem>>, vector<1x8x128xf32>,
    %c0_177 = arith.constant 0 : index
    %c0_178 = arith.constant 0 : index
    %230 = vector.load %arg7[%c0_177, %c0_178] : memref<128x128xf32, #tpu.memory_space<vmem>>, vector<128x128xf32>
    %cst_179 = arith.constant dense<0.000000e+00> : vector<8x128xf32>
    %231 = tpu.matmul %224, %230, %cst_179 {dimension_numbers = #tpu.dot_dimension_numbers<[1], [0], [0], [1], [0, 0, 1, 1], [], []>} : vector<8x128xf32>, vector<128x128xf32>, vector<8x128xf32> -> vector<8x128xf32>
    %c0_180 = arith.constant 0 : index
    %c0_181 = arith.constant 0 : index
    %232 = vector.load %arg8[%c0_180, %c0_181] : memref<1x128xf32, #tpu.memory_space<vmem>>, vector<1x128xf32>
    %233 = vector.broadcast %232 : vector<1x128xf32> to vector<8x128xf32>
    %234 = arith.addf %231, %233 : vector<8x128xf32>
    %235 = arith.index_cast %c7_i32 : i32 to index
    %c0_182 = arith.constant 0 : index
    %c0_183 = arith.constant 0 : index
    %236 = vector.load %arg9[%235, %c0_182, %c0_183] : memref<8x8x128xf32, #tpu.memory_space<vmem>>, vector<1x8x128xf32>
    %237 = vector.shape_cast %236 : vector<1x8x128xf32> to vector<8x128xf32>
    %238 = vector.shape_cast %234 : vector<8x128xf32> to vector<1x8x128xf32>
    tpu.vector_store %arg9[%235, %c0_182, %c0_183], %238 {strides = array<i32>} : memref<8x8x128xf32, #tpu.memory_space<vmem>>, vector<1x8x128xf32>,
    %c8_i32 = arith.constant 8 : i32
    return
  }
  func.func @transform_0(%arg0: i32, %arg1: i32) -> i32 {
    %c0_i32 = arith.constant 0 : i32
    %c0_i32_0 = arith.constant 0 : i32
    return %c0_i32 : i32
  }
  func.func @transform_1(%arg0: i32, %arg1: i32) -> (i32, i32, i32) {
    %c0_i32 = arith.constant 0 : i32
    %c0_i32_0 = arith.constant 0 : i32
    return %arg1, %arg0, %c0_i32 : i32, i32, i32
  }
  func.func @transform_2(%arg0: i32, %arg1: i32) -> (i32, i32) {
    %c0_i32 = arith.constant 0 : i32
    %c0_i32_0 = arith.constant 0 : i32
    return %arg0, %c0_i32 : i32, i32
  }
  func.func @transform_3(%arg0: i32, %arg1: i32) -> (i32, i32) {
    %c0_i32 = arith.constant 0 : i32
    %c0_i32_0 = arith.constant 0 : i32
    %c0_i32_1 = arith.constant 0 : i32
    return %c0_i32, %c0_i32_0 : i32, i32
  }
  func.func @transform_4(%arg0: i32, %arg1: i32) -> (i32, i32) {
    %c0_i32 = arith.constant 0 : i32
    %c0_i32_0 = arith.constant 0 : i32
    %c0_i32_1 = arith.constant 0 : i32
    return %c0_i32, %c0_i32_0 : i32, i32
  }
  func.func @transform_5(%arg0: i32, %arg1: i32) -> (i32, i32) {
    %c0_i32 = arith.constant 0 : i32
    %c0_i32_0 = arith.constant 0 : i32
    %c0_i32_1 = arith.constant 0 : i32
    return %c0_i32, %c0_i32_0 : i32, i32
  }
  func.func @transform_6(%arg0: i32, %arg1: i32) -> (i32, i32) {
    %c0_i32 = arith.constant 0 : i32
    %c0_i32_0 = arith.constant 0 : i32
    %c0_i32_1 = arith.constant 0 : i32
    return %c0_i32, %c0_i32_0 : i32, i32
  }
  func.func @transform_7(%arg0: i32, %arg1: i32) -> (i32, i32, i32) {
    %c0_i32 = arith.constant 0 : i32
    %c0_i32_0 = arith.constant 0 : i32
    return %arg1, %arg0, %c0_i32 : i32, i32, i32
  }
  func.func @transform_8(%arg0: i32, %arg1: i32) -> (i32, i32, i32) {
    %c0_i32 = arith.constant 0 : i32
    %c0_i32_0 = arith.constant 0 : i32
    return %arg1, %arg0, %c0_i32 : i32, i32, i32
  }
}

</mosaic_0001>

<llo_original>
// kernel: tpu_custom_call.1
$region0: #{tpu_custom_call.1}
  #allocation0 [shape = 'u32[]', space=smem, size = 0x4, offset = 0x4, fixed_abs, tag = 'smem constant byte address 0x4 - core index']
  #allocation1 [shape = 'u32[144,128]{1,0:T(1,128)}', space=vmem, size = 0x12000, scoped, tag = 'internal scratch']
  #allocation2 [shape = 'f32[8,128]{1,0:T(8,128)}', space=vmem, size = 0x1000, scoped, tag = 'scratch operand']
  %s0 = inlined_call_operand.hbm [shape: f32[2], index: 0, kind: input, shape index: {}]
  %s1 = inlined_call_operand.hbm [shape: f32[8,8,16], index: 1, kind: input, shape index: {}]
  %s2 = inlined_call_operand.hbm [shape: f32[8,32], index: 2, kind: input, shape index: {}]
  %s3 = inlined_call_operand.hbm [shape: f32[128,128], index: 3, kind: input, shape index: {}]
  %s4 = inlined_call_operand.vmem [shape: f32[1,128], index: 4, kind: input, shape index: {}]
  %s5 = inlined_call_operand.hbm [shape: f32[128,128], index: 5, kind: input, shape index: {}]
  %s6 = inlined_call_operand.vmem [shape: f32[1,128], index: 6, kind: input, shape index: {}]
  %s7 = inlined_call_operand.hbm [shape: f32[8,8,128], index: 7, kind: output, shape index: {0}]
  %s8 = inlined_call_operand.hbm [shape: f32[8,8,128], index: 8, kind: output, shape index: {1}]
  %9 = xla_tuple %s7, %s8
  %s10 = sld [smem:[#allocation0]]
  $region70: #{tpu_custom_call.1} parent=0
    _
  %s12 = ssub.s32 1, %s10
  %s13 = scalar_select 0, %s12, %s10
  $region1: #{tpu_custom_call.1} parent=0
    #allocation3 [shape = 'u8[512]{0}', space=smem, size = 0x200, scoped, tag = 'input window, operand 0, single buffered']
    #allocation4 [shape = 's32[1]{0}', space=sflag, size = 0x4, scoped, tag = 'scoped memory for tpu_custom_call.1']
    #allocation5 [shape = 's32[1]{0}', space=sflag, size = 0x4, scoped, tag = 'scoped memory for tpu_custom_call.1']
    #allocation6 [shape = 's32[1]{0}', space=sflag, size = 0x4, scoped, tag = 'scoped memory for tpu_custom_call.1']
    #allocation7 [shape = 'u8[32768]{0}', space=vmem, size = 0x8000, scoped, tag = 'input window, operand 1, single buffered']
    #allocation8 [shape = 'u8[4096]{0}', space=vmem, size = 0x1000, scoped, tag = 'input window, operand 2, single buffered']
    #allocation9 [shape = 's32[1]{0}', space=sflag, size = 0x4, scoped, tag = 'scoped memory for tpu_custom_call.1']
    #allocation10 [shape = 'u8[65536]{0}', space=vmem, size = 0x10000, scoped, tag = 'input window, operand 3, single buffered']
    #allocation11 [shape = 'u8[65536]{0}', space=vmem, size = 0x10000, scoped, tag = 'input window, operand 5, single buffered']
    #allocation12 [shape = 's32[1]{0}', space=sflag, size = 0x4, scoped, tag = 'scoped memory for tpu_custom_call.1']
    #allocation13 [shape = 'u8[32768]{0}', space=vmem, size = 0x8000, scoped, tag = 'output window, operand 0, single buffered']
    #allocation14 [shape = 'u8[32768]{0}', space=vmem, size = 0x8000, scoped, tag = 'output window, operand 1, single buffered']
    #allocation15 [shape = 's32[1]{0}', space=sflag, size = 0x4, scoped, tag = 'scoped memory for tpu_custom_call.1']
    %14 = vsyncpa [#allocation6], 0
    %15 = vsyncpa [#allocation4], 0
    %16 = vsyncpa [#allocation9], 0
    %17 = vsyncpa [#allocation12], 0
    %18 = vsyncpa [#allocation5], 0
    %19 = vsyncpa [#allocation15], 0
    // Predicated region
    $region2: #{tpu_custom_call.1} parent=1 // pred_check
      _
    $region3: #{tpu_custom_call.1} parent=1 // pred_check_branch
      %21 = sbr.rel (0) target = $region5
    $region4: #{tpu_custom_call.1} parent=1 // pred_region
      %s23 = ssub.s32 16, 16
      %24 = vsyncadd [#allocation6], %s23
      %27 = dma.hbm_to_smem %s0, 16, [#allocation3], [#allocation6]
    $region5: #{tpu_custom_call.1} parent=1 // pred_fallthru
      _
    // Predicated region
    $region6: #{tpu_custom_call.1} parent=1 // pred_check
      _
    $region7: #{tpu_custom_call.1} parent=1 // pred_check_branch
      %29 = sbr.rel (0) target = $region9
    $region8: #{tpu_custom_call.1} parent=1 // pred_region
      %s31 = ssub.s32 1024, 1024
      %32 = vsyncadd [#allocation4], %s31
      %s33 = sshll.u32 [#allocation7], 4
      %s34 = int_to_ptr.vmem [resolvable:$true] %s33
      %39 = dma.hbm_to_vmem [thread:$0]  %s1, 1024, %s34, [#allocation4], 128, 128, 8
    $region9: #{tpu_custom_call.1} parent=1 // pred_fallthru
      _
    // Predicated region
    $region10: #{tpu_custom_call.1} parent=1 // pred_check
      _
    $region11: #{tpu_custom_call.1} parent=1 // pred_check_branch
      %41 = sbr.rel (0) target = $region13
    $region12: #{tpu_custom_call.1} parent=1 // pred_region
      %s43 = ssub.s32 128, 128
      %44 = vsyncadd [#allocation9], %s43
      %s46 = sshll.u32 [#allocation8], 4
      %s47 = int_to_ptr.vmem [resolvable:$true] %s46
      %49 = dma.hbm_to_vmem [thread:$0]  %s2, 128, %s47, [#allocation9]
    $region13: #{tpu_custom_call.1} parent=1 // pred_fallthru
      _
    // Predicated region
    $region14: #{tpu_custom_call.1} parent=1 // pred_check
      _
    $region15: #{tpu_custom_call.1} parent=1 // pred_check_branch
      %51 = sbr.rel (0) target = $region17
    $region16: #{tpu_custom_call.1} parent=1 // pred_region
      %s53 = ssub.s32 2048, 2048
      %54 = vsyncadd [#allocation9], %s53
      %s55 = sshll.u32 [#allocation10], 4
      %s56 = int_to_ptr.vmem [resolvable:$true] %s55
      %61 = dma.hbm_to_vmem [thread:$0]  %s3, 2048, %s56, [#allocation9], 128, 128, 8
    $region17: #{tpu_custom_call.1} parent=1 // pred_fallthru
      _
    // Predicated region
    $region18: #{tpu_custom_call.1} parent=1 // pred_check
      _
    $region19: #{tpu_custom_call.1} parent=1 // pred_check_branch
      %63 = sbr.rel (0) target = $region21
    $region20: #{tpu_custom_call.1} parent=1 // pred_region
      _
    $region21: #{tpu_custom_call.1} parent=1 // pred_fallthru
      _
    // Predicated region
    $region22: #{tpu_custom_call.1} parent=1 // pred_check
      _
    $region23: #{tpu_custom_call.1} parent=1 // pred_check_branch
      %65 = sbr.rel (0) target = $region25
    $region24: #{tpu_custom_call.1} parent=1 // pred_region
      %s67 = ssub.s32 2048, 2048
      %68 = vsyncadd [#allocation12], %s67
      %s69 = sshll.u32 [#allocation11], 4
      %s70 = int_to_ptr.vmem [resolvable:$true] %s69
      %75 = dma.hbm_to_vmem [thread:$0]  %s5, 2048, %s70, [#allocation12], 128, 128, 8
    $region25: #{tpu_custom_call.1} parent=1 // pred_fallthru
      _
    // Predicated region
    $region26: #{tpu_custom_call.1} parent=1 // pred_check
      _
    $region27: #{tpu_custom_call.1} parent=1 // pred_check_branch
      %77 = sbr.rel (0) target = $region29
    $region28: #{tpu_custom_call.1} parent=1 // pred_region
      _
    $region29: #{tpu_custom_call.1} parent=1 // pred_fallthru
      _
    // Predicated region
    $region30: #{tpu_custom_call.1} parent=1 // pred_check
      _
    $region31: #{tpu_custom_call.1} parent=1 // pred_check_branch
      %79 = sbr.rel (0) target = $region33
    $region32: #{tpu_custom_call.1} parent=1 // pred_region
      %80 = dma.done [#allocation6], 16
    $region33: #{tpu_custom_call.1} parent=1 // pred_fallthru
      _
    // Predicated region
    $region34: #{tpu_custom_call.1} parent=1 // pred_check
      _
    $region35: #{tpu_custom_call.1} parent=1 // pred_check_branch
      %82 = sbr.rel (0) target = $region37
    $region36: #{tpu_custom_call.1} parent=1 // pred_region
      %83 = dma.done [#allocation4], 1024
    $region37: #{tpu_custom_call.1} parent=1 // pred_fallthru
      _
    // Predicated region
    $region38: #{tpu_custom_call.1} parent=1 // pred_check
      _
    $region39: #{tpu_custom_call.1} parent=1 // pred_check_branch
      %85 = sbr.rel (0) target = $region41
    $region40: #{tpu_custom_call.1} parent=1 // pred_region
      %86 = dma.done [#allocation9], 128
    $region41: #{tpu_custom_call.1} parent=1 // pred_fallthru
      _
    // Predicated region
    $region42: #{tpu_custom_call.1} parent=1 // pred_check
      _
    $region43: #{tpu_custom_call.1} parent=1 // pred_check_branch
      %88 = sbr.rel (0) target = $region45
    $region44: #{tpu_custom_call.1} parent=1 // pred_region
      %89 = dma.done [#allocation9], 2048
    $region45: #{tpu_custom_call.1} parent=1 // pred_fallthru
      _
    // Predicated region
    $region46: #{tpu_custom_call.1} parent=1 // pred_check
      _
    $region47: #{tpu_custom_call.1} parent=1 // pred_check_branch
      %91 = sbr.rel (0) target = $region49
    $region48: #{tpu_custom_call.1} parent=1 // pred_region
      %92 = dma.done [#allocation12], 2048
    $region49: #{tpu_custom_call.1} parent=1 // pred_fallthru
      _
    %93 = sfence
    %p94 = scmp.eq.s32.totalorder 0, 0
    // Predicated region
    $region50: #{tpu_custom_call.1} parent=1 // pred_check
      %p95 = pneg %p94
    $region51: #{tpu_custom_call.1} parent=1 // pred_check_branch
      %97 = sbr.rel (%p95) target = $region53
    $region52: #{tpu_custom_call.1} parent=1 // pred_region
      %98 = vst [vmem:[#allocation2] sm:$0xff] 0.0
      %v99 = vld [vmem:[#allocation8] sm:$0xff]
      %vm100 = vcmask 261120
      %101 = vst.msk [vmem:[#allocation2] sm:$0xff] %vm100, %v99
    $region53: #{tpu_custom_call.1} parent=1 // pred_fallthru
      _
    %s102 = sld [smem:[#allocation3]]
    %v103 = vstv %s102
    %s104 = sld [smem:[#allocation3 + $0x1]]
    %v105 = vstv %s104
    %v106 = vld [vmem:[#allocation7] sm:$0xff]
    %108 = vrot.lane.b32.xlu0 %v106, 32
    %v109 = vpop.permute.xlu0 %108
    %vm111 = vcmask 392448
    %112 = vst.msk [vmem:[#allocation2] sm:$0xff] %vm111, %v109
    %v113 = vld [vmem:[#allocation2] sm:$0xff]
    %v114 = vld [vmem:[#allocation10] sm:$0xff]
    %v115 = vld [vmem:[#allocation10 + $0x8] sm:$0xff]
    %v116 = vld [vmem:[#allocation10 + $0x10] sm:$0xff]
    %v117 = vld [vmem:[#allocation10 + $0x18] sm:$0xff]
    %v118 = vld [vmem:[#allocation10 + $0x20] sm:$0xff]
    %v119 = vld [vmem:[#allocation10 + $0x28] sm:$0xff]
    %v120 = vld [vmem:[#allocation10 + $0x30] sm:$0xff]
    %v121 = vld [vmem:[#allocation10 + $0x38] sm:$0xff]
    %v122 = vld [vmem:[#allocation10 + $0x40] sm:$0xff]
    %v123 = vld [vmem:[#allocation10 + $0x48] sm:$0xff]
    %v124 = vld [vmem:[#allocation10 + $0x50] sm:$0xff]
    %v125 = vld [vmem:[#allocation10 + $0x58] sm:$0xff]
    %v126 = vld [vmem:[#allocation10 + $0x60] sm:$0xff]
    %v127 = vld [vmem:[#allocation10 + $0x68] sm:$0xff]
    %v128 = vld [vmem:[#allocation10 + $0x70] sm:$0xff]
    %v129 = vld [vmem:[#allocation10 + $0x78] sm:$0xff]
    %v130 = vld [vmem:[%s4] sm:$0x1]
    %v132 = vlaneseq
    %v133 = vshrl.u32 %v132, 7
    %v134 = vsub.s32 0, %v133
    %v135 = vrot.slane %v130, %v134
    %137 = vmatprep.subr.mxu0 0.0
    %138 = vmatpush1.msra.mxu0 %v114
    %139 = vmatprep.subr.mxu0 0.0
    %140 = vmatpush1.msra.mxu0 %v115
    %141 = vmatprep.subr.mxu0 0.0
    %142 = vmatpush1.msra.mxu0 %v116
    %143 = vmatprep.subr.mxu0 0.0
    %144 = vmatpush1.msra.mxu0 %v117
    %145 = vmatprep.subr.mxu0 0.0
    %146 = vmatpush1.msra.mxu0 %v118
    %147 = vmatprep.subr.mxu0 0.0
    %148 = vmatpush1.msra.mxu0 %v119
    %149 = vmatprep.subr.mxu0 0.0
    %150 = vmatpush1.msra.mxu0 %v120
    %151 = vmatprep.subr.mxu0 0.0
    %152 = vmatpush1.msra.mxu0 %v121
    %153 = vmatprep.subr.mxu0 0.0
    %154 = vmatpush1.msra.mxu0 %v122
    %155 = vmatprep.subr.mxu0 0.0
    %156 = vmatpush1.msra.mxu0 %v123
    %157 = vmatprep.subr.mxu0 0.0
    %158 = vmatpush1.msra.mxu0 %v124
    %159 = vmatprep.subr.mxu0 0.0
    %160 = vmatpush1.msra.mxu0 %v125
    %161 = vmatprep.subr.mxu0 0.0
    %162 = vmatpush1.msra.mxu0 %v126
    %163 = vmatprep.subr.mxu0 0.0
    %164 = vmatpush1.msra.mxu0 %v127
    %165 = vmatprep.subr.mxu0 0.0
    %166 = vmatpush1.msra.mxu0 %v128
    %167 = vmatprep.subr.mxu0 0.0
    %168 = vmatpush1.msra.mxu0 %v129
    %169 = vmatprep.subr.mxu0 0.0
    %170 = vmatpush1.msra.mxu0 0.0
    %171 = vmatprep.subr.mxu0 0.0
    %172 = vmatpush1.msra.mxu0 0.0
    %173 = vmatprep.subr.mxu0 0.0
    %174 = vmatpush1.msra.mxu0 0.0
    %175 = vmatprep.subr.mxu0 0.0
    %176 = vmatpush1.msra.mxu0 0.0
    %177 = vmatprep.subr.mxu0 0.0
    %178 = vmatpush1.msra.mxu0 0.0
    %179 = vmatprep.subr.mxu0 0.0
    %180 = vmatpush1.msra.mxu0 0.0
    %181 = vmatprep.subr.mxu0 0.0
    %182 = vmatpush1.msra.mxu0 0.0
    %183 = vmatprep.subr.mxu0 0.0
    %184 = vmatpush1.msra.mxu0 0.0
    %185 = vmatprep.subr.mxu0 0.0
    %186 = vmatpush1.msra.mxu0 0.0
    %187 = vmatprep.subr.mxu0 0.0
    %188 = vmatpush1.msra.mxu0 0.0
    %189 = vmatprep.subr.mxu0 0.0
    %190 = vmatpush1.msra.mxu0 0.0
    %191 = vmatprep.subr.mxu0 0.0
    %192 = vmatpush1.msra.mxu0 0.0
    %193 = vmatprep.subr.mxu0 0.0
    %194 = vmatpush1.msra.mxu0 0.0
    %195 = vmatprep.subr.mxu0 0.0
    %196 = vmatpush1.msra.mxu0 0.0
    %197 = vmatprep.subr.mxu0 0.0
    %198 = vmatpush1.msra.mxu0 0.0
    %199 = vmatprep.subr.mxu0 0.0
    %200 = vmatpush1.msra.mxu0 0.0
    %201 = vmatprep.mubr.f32.mxu0 0.0
    %202 = vmatmul.mubr.f32.gmra.mrb[0].mxu0 %v113
    %v203 = vpop.f32.mrb[0].mxu0
    %v204 = vadd.f32 %v135, %v203
    %v205 = vpop.f32.mrb[0].mxu0
    %206 = vdwg.mxu0
    %v207 = vmax.f32 %v204, 0.0
    %v208 = vmul.f32 %v103, %v207
    %v209 = vmul.f32 %v105, %v113
    %v210 = vadd.f32 %v208, %v209
    %211 = vst [vmem:[#allocation2] sm:$0xff] %v210
    %212 = vst [vmem:[#allocation14] sm:$0xff] %v210
    %v213 = vld [vmem:[#allocation11] sm:$0xff]
    %v214 = vld [vmem:[#allocation11 + $0x8] sm:$0xff]
    %v215 = vld [vmem:[#allocation11 + $0x10] sm:$0xff]
    %v216 = vld [vmem:[#allocation11 + $0x18] sm:$0xff]
    %v217 = vld [vmem:[#allocation11 + $0x20] sm:$0xff]
    %v218 = vld [vmem:[#allocation11 + $0x28] sm:$0xff]
    %v219 = vld [vmem:[#allocation11 + $0x30] sm:$0xff]
    %v220 = vld [vmem:[#allocation11 + $0x38] sm:$0xff]
    %v221 = vld [vmem:[#allocation11 + $0x40] sm:$0xff]
    %v222 = vld [vmem:[#allocation11 + $0x48] sm:$0xff]
    %v223 = vld [vmem:[#allocation11 + $0x50] sm:$0xff]
    %v224 = vld [vmem:[#allocation11 + $0x58] sm:$0xff]
    %v225 = vld [vmem:[#allocation11 + $0x60] sm:$0xff]
    %v226 = vld [vmem:[#allocation11 + $0x68] sm:$0xff]
    %v227 = vld [vmem:[#allocation11 + $0x70] sm:$0xff]
    %v228 = vld [vmem:[#allocation11 + $0x78] sm:$0xff]
    %v229 = vld [vmem:[%s6] sm:$0x1]
    %v231 = vlaneseq
    %v232 = vshrl.u32 %v231, 7
    %v233 = vsub.s32 0, %v232
    %v234 = vrot.slane %v229, %v233
    %236 = vmatprep.subr.mxu0 0.0
    %237 = vmatpush1.msra.mxu0 %v213
    %238 = vmatprep.subr.mxu0 0.0
    %239 = vmatpush1.msra.mxu0 %v214
    %240 = vmatprep.subr.mxu0 0.0
    %241 = vmatpush1.msra.mxu0 %v215
    %242 = vmatprep.subr.mxu0 0.0
    %243 = vmatpush1.msra.mxu0 %v216
    %244 = vmatprep.subr.mxu0 0.0
    %245 = vmatpush1.msra.mxu0 %v217
    %246 = vmatprep.subr.mxu0 0.0
    %247 = vmatpush1.msra.mxu0 %v218
    %248 = vmatprep.subr.mxu0 0.0
    %249 = vmatpush1.msra.mxu0 %v219
    %250 = vmatprep.subr.mxu0 0.0
    %251 = vmatpush1.msra.mxu0 %v220
    %252 = vmatprep.subr.mxu0 0.0
    %253 = vmatpush1.msra.mxu0 %v221
    %254 = vmatprep.subr.mxu0 0.0
    %255 = vmatpush1.msra.mxu0 %v222
    %256 = vmatprep.subr.mxu0 0.0
    %257 = vmatpush1.msra.mxu0 %v223
    %258 = vmatprep.subr.mxu0 0.0
    %259 = vmatpush1.msra.mxu0 %v224
    %260 = vmatprep.subr.mxu0 0.0
    %261 = vmatpush1.msra.mxu0 %v225
    %262 = vmatprep.subr.mxu0 0.0
    %263 = vmatpush1.msra.mxu0 %v226
    %264 = vmatprep.subr.mxu0 0.0
    %265 = vmatpush1.msra.mxu0 %v227
    %266 = vmatprep.subr.mxu0 0.0
    %267 = vmatpush1.msra.mxu0 %v228
    %268 = vmatprep.subr.mxu0 0.0
    %269 = vmatpush1.msra.mxu0 0.0
    %270 = vmatprep.subr.mxu0 0.0
    %271 = vmatpush1.msra.mxu0 0.0
    %272 = vmatprep.subr.mxu0 0.0
    %273 = vmatpush1.msra.mxu0 0.0
    %274 = vmatprep.subr.mxu0 0.0
    %275 = vmatpush1.msra.mxu0 0.0
    %276 = vmatprep.subr.mxu0 0.0
    %277 = vmatpush1.msra.mxu0 0.0
    %278 = vmatprep.subr.mxu0 0.0
    %279 = vmatpush1.msra.mxu0 0.0
    %280 = vmatprep.subr.mxu0 0.0
    %281 = vmatpush1.msra.mxu0 0.0
    %282 = vmatprep.subr.mxu0 0.0
    %283 = vmatpush1.msra.mxu0 0.0
    %284 = vmatprep.subr.mxu0 0.0
    %285 = vmatpush1.msra.mxu0 0.0
    %286 = vmatprep.subr.mxu0 0.0
    %287 = vmatpush1.msra.mxu0 0.0
    %288 = vmatprep.subr.mxu0 0.0
    %289 = vmatpush1.msra.mxu0 0.0
    %290 = vmatprep.subr.mxu0 0.0
    %291 = vmatpush1.msra.mxu0 0.0
    %292 = vmatprep.subr.mxu0 0.0
    %293 = vmatpush1.msra.mxu0 0.0
    %294 = vmatprep.subr.mxu0 0.0
    %295 = vmatpush1.msra.mxu0 0.0
    %296 = vmatprep.subr.mxu0 0.0
    %297 = vmatpush1.msra.mxu0 0.0
    %298 = vmatprep.subr.mxu0 0.0
    %299 = vmatpush1.msra.mxu0 0.0
    %300 = vmatprep.mubr.f32.mxu0 0.0
    %301 = vmatmul.mubr.f32.gmra.mrb[0].mxu0 %v210
    %v302 = vpop.f32.mrb[0].mxu0
    %v303 = vadd.f32 %v234, %v302
    %v304 = vpop.f32.mrb[0].mxu0
    %305 = vdwg.mxu0
    %306 = vst [vmem:[#allocation13] sm:$0xff] %v303
    %s307 = scalar_lea.vmem [#allocation7], 8
    %v308 = vld [vmem:[%s307] sm:$0xff]
    %310 = vrot.lane.b32.xlu0 %v308, 32
    %v311 = vpop.permute.xlu0 %310
    %313 = vst.msk [vmem:[#allocation2] sm:$0xff] %vm111, %v311
    %v314 = vld [vmem:[#allocation2] sm:$0xff]
    %v315 = vld [vmem:[#allocation10] sm:$0xff]
    %v316 = vld [vmem:[#allocation10 + $0x8] sm:$0xff]
    %v317 = vld [vmem:[#allocation10 + $0x10] sm:$0xff]
    %v318 = vld [vmem:[#allocation10 + $0x18] sm:$0xff]
    %v319 = vld [vmem:[#allocation10 + $0x20] sm:$0xff]
    %v320 = vld [vmem:[#allocation10 + $0x28] sm:$0xff]
    %v321 = vld [vmem:[#allocation10 + $0x30] sm:$0xff]
    %v322 = vld [vmem:[#allocation10 + $0x38] sm:$0xff]
    %v323 = vld [vmem:[#allocation10 + $0x40] sm:$0xff]
    %v324 = vld [vmem:[#allocation10 + $0x48] sm:$0xff]
    %v325 = vld [vmem:[#allocation10 + $0x50] sm:$0xff]
    %v326 = vld [vmem:[#allocation10 + $0x58] sm:$0xff]
    %v327 = vld [vmem:[#allocation10 + $0x60] sm:$0xff]
    %v328 = vld [vmem:[#allocation10 + $0x68] sm:$0xff]
    %v329 = vld [vmem:[#allocation10 + $0x70] sm:$0xff]
    %v330 = vld [vmem:[#allocation10 + $0x78] sm:$0xff]
    %v331 = vld [vmem:[%s4] sm:$0x1]
    %v333 = vlaneseq
    %v334 = vshrl.u32 %v333, 7
    %v335 = vsub.s32 0, %v334
    %v336 = vrot.slane %v331, %v335
    %338 = vmatprep.subr.mxu0 0.0
    %339 = vmatpush1.msra.mxu0 %v315
    %340 = vmatprep.subr.mxu0 0.0
    %341 = vmatpush1.msra.mxu0 %v316
    %342 = vmatprep.subr.mxu0 0.0
    %343 = vmatpush1.msra.mxu0 %v317
    %344 = vmatprep.subr.mxu0 0.0
    %345 = vmatpush1.msra.mxu0 %v318
    %346 = vmatprep.subr.mxu0 0.0
    %347 = vmatpush1.msra.mxu0 %v319
    %348 = vmatprep.subr.mxu0 0.0
    %349 = vmatpush1.msra.mxu0 %v320
    %350 = vmatprep.subr.mxu0 0.0
    %351 = vmatpush1.msra.mxu0 %v321
    %352 = vmatprep.subr.mxu0 0.0
    %353 = vmatpush1.msra.mxu0 %v322
    %354 = vmatprep.subr.mxu0 0.0
    %355 = vmatpush1.msra.mxu0 %v323
    %356 = vmatprep.subr.mxu0 0.0
    %357 = vmatpush1.msra.mxu0 %v324
    %358 = vmatprep.subr.mxu0 0.0
    %359 = vmatpush1.msra.mxu0 %v325
    %360 = vmatprep.subr.mxu0 0.0
    %361 = vmatpush1.msra.mxu0 %v326
    %362 = vmatprep.subr.mxu0 0.0
    %363 = vmatpush1.msra.mxu0 %v327
    %364 = vmatprep.subr.mxu0 0.0
    %365 = vmatpush1.msra.mxu0 %v328
    %366 = vmatprep.subr.mxu0 0.0
    %367 = vmatpush1.msra.mxu0 %v329
    %368 = vmatprep.subr.mxu0 0.0
    %369 = vmatpush1.msra.mxu0 %v330
    %370 = vmatprep.subr.mxu0 0.0
    %371 = vmatpush1.msra.mxu0 0.0
    %372 = vmatprep.subr.mxu0 0.0
    %373 = vmatpush1.msra.mxu0 0.0
    %374 = vmatprep.subr.mxu0 0.0
    %375 = vmatpush1.msra.mxu0 0.0
    %376 = vmatprep.subr.mxu0 0.0
    %377 = vmatpush1.msra.mxu0 0.0
    %378 = vmatprep.subr.mxu0 0.0
    %379 = vmatpush1.msra.mxu0 0.0
    %380 = vmatprep.subr.mxu0 0.0
    %381 = vmatpush1.msra.mxu0 0.0
    %382 = vmatprep.subr.mxu0 0.0
    %383 = vmatpush1.msra.mxu0 0.0
    %384 = vmatprep.subr.mxu0 0.0
    %385 = vmatpush1.msra.mxu0 0.0
    %386 = vmatprep.subr.mxu0 0.0
    %387 = vmatpush1.msra.mxu0 0.0
    %388 = vmatprep.subr.mxu0 0.0
    %389 = vmatpush1.msra.mxu0 0.0
    %390 = vmatprep.subr.mxu0 0.0
    %391 = vmatpush1.msra.mxu0 0.0
    %392 = vmatprep.subr.mxu0 0.0
    %393 = vmatpush1.msra.mxu0 0.0
    %394 = vmatprep.subr.mxu0 0.0
    %395 = vmatpush1.msra.mxu0 0.0
    %396 = vmatprep.subr.mxu0 0.0
    %397 = vmatpush1.msra.mxu0 0.0
    %398 = vmatprep.subr.mxu0 0.0
    %399 = vmatpush1.msra.mxu0 0.0
    %400 = vmatprep.subr.mxu0 0.0
    %401 = vmatpush1.msra.mxu0 0.0
    %402 = vmatprep.mubr.f32.mxu0 0.0
    %403 = vmatmul.mubr.f32.gmra.mrb[0].mxu0 %v314
    %v404 = vpop.f32.mrb[0].mxu0
    %v405 = vadd.f32 %v336, %v404
    %v406 = vpop.f32.mrb[0].mxu0
    %407 = vdwg.mxu0
    %v408 = vmax.f32 %v405, 0.0
    %v409 = vmul.f32 %v103, %v408
    %v410 = vmul.f32 %v105, %v314
    %v411 = vadd.f32 %v409, %v410
    %412 = vst [vmem:[#allocation2] sm:$0xff] %v411
    %s413 = scalar_lea.vmem [#allocation14], 8
    %414 = vst [vmem:[%s413] sm:$0xff] %v411
    %v415 = vld [vmem:[#allocation11] sm:$0xff]
    %v416 = vld [vmem:[#allocation11 + $0x8] sm:$0xff]
    %v417 = vld [vmem:[#allocation11 + $0x10] sm:$0xff]
    %v418 = vld [vmem:[#allocation11 + $0x18] sm:$0xff]
    %v419 = vld [vmem:[#allocation11 + $0x20] sm:$0xff]
    %v420 = vld [vmem:[#allocation11 + $0x28] sm:$0xff]
    %v421 = vld [vmem:[#allocation11 + $0x30] sm:$0xff]
    %v422 = vld [vmem:[#allocation11 + $0x38] sm:$0xff]
    %v423 = vld [vmem:[#allocation11 + $0x40] sm:$0xff]
    %v424 = vld [vmem:[#allocation11 + $0x48] sm:$0xff]
    %v425 = vld [vmem:[#allocation11 + $0x50] sm:$0xff]
    %v426 = vld [vmem:[#allocation11 + $0x58] sm:$0xff]
    %v427 = vld [vmem:[#allocation11 + $0x60] sm:$0xff]
    %v428 = vld [vmem:[#allocation11 + $0x68] sm:$0xff]
    %v429 = vld [vmem:[#allocation11 + $0x70] sm:$0xff]
    %v430 = vld [vmem:[#allocation11 + $0x78] sm:$0xff]
    %v431 = vld [vmem:[%s6] sm:$0x1]
    %v433 = vlaneseq
    %v434 = vshrl.u32 %v433, 7
    %v435 = vsub.s32 0, %v434
    %v436 = vrot.slane %v431, %v435
    %438 = vmatprep.subr.mxu0 0.0
    %439 = vmatpush1.msra.mxu0 %v415
    %440 = vmatprep.subr.mxu0 0.0
    %441 = vmatpush1.msra.mxu0 %v416
    %442 = vmatprep.subr.mxu0 0.0
    %443 = vmatpush1.msra.mxu0 %v417
    %444 = vmatprep.subr.mxu0 0.0
    %445 = vmatpush1.msra.mxu0 %v418
    %446 = vmatprep.subr.mxu0 0.0
    %447 = vmatpush1.msra.mxu0 %v419
    %448 = vmatprep.subr.mxu0 0.0
    %449 = vmatpush1.msra.mxu0 %v420
    %450 = vmatprep.subr.mxu0 0.0
    %451 = vmatpush1.msra.mxu0 %v421
    %452 = vmatprep.subr.mxu0 0.0
    %453 = vmatpush1.msra.mxu0 %v422
    %454 = vmatprep.subr.mxu0 0.0
    %455 = vmatpush1.msra.mxu0 %v423
    %456 = vmatprep.subr.mxu0 0.0
    %457 = vmatpush1.msra.mxu0 %v424
    %458 = vmatprep.subr.mxu0 0.0
    %459 = vmatpush1.msra.mxu0 %v425
    %460 = vmatprep.subr.mxu0 0.0
    %461 = vmatpush1.msra.mxu0 %v426
    %462 = vmatprep.subr.mxu0 0.0
    %463 = vmatpush1.msra.mxu0 %v427
    %464 = vmatprep.subr.mxu0 0.0
    %465 = vmatpush1.msra.mxu0 %v428
    %466 = vmatprep.subr.mxu0 0.0
    %467 = vmatpush1.msra.mxu0 %v429
    %468 = vmatprep.subr.mxu0 0.0
    %469 = vmatpush1.msra.mxu0 %v430
    %470 = vmatprep.subr.mxu0 0.0
    %471 = vmatpush1.msra.mxu0 0.0
    %472 = vmatprep.subr.mxu0 0.0
    %473 = vmatpush1.msra.mxu0 0.0
    %474 = vmatprep.subr.mxu0 0.0
    %475 = vmatpush1.msra.mxu0 0.0
    %476 = vmatprep.subr.mxu0 0.0
    %477 = vmatpush1.msra.mxu0 0.0
    %478 = vmatprep.subr.mxu0 0.0
    %479 = vmatpush1.msra.mxu0 0.0
    %480 = vmatprep.subr.mxu0 0.0
    %481 = vmatpush1.msra.mxu0 0.0
    %482 = vmatprep.subr.mxu0 0.0
    %483 = vmatpush1.msra.mxu0 0.0
    %484 = vmatprep.subr.mxu0 0.0
    %485 = vmatpush1.msra.mxu0 0.0
    %486 = vmatprep.subr.mxu0 0.0
    %487 = vmatpush1.msra.mxu0 0.0
    %488 = vmatprep.subr.mxu0 0.0
    %489 = vmatpush1.msra.mxu0 0.0
    %490 = vmatprep.subr.mxu0 0.0
    %491 = vmatpush1.msra.mxu0 0.0
    %492 = vmatprep.subr.mxu0 0.0
    %493 = vmatpush1.msra.mxu0 0.0
    %494 = vmatprep.subr.mxu0 0.0
    %495 = vmatpush1.msra.mxu0 0.0
    %496 = vmatprep.subr.mxu0 0.0
    %497 = vmatpush1.msra.mxu0 0.0
    %498 = vmatprep.subr.mxu0 0.0
    %499 = vmatpush1.msra.mxu0 0.0
    %500 = vmatprep.subr.mxu0 0.0
    %501 = vmatpush1.msra.mxu0 0.0
    %502 = vmatprep.mubr.f32.mxu0 0.0
    %503 = vmatmul.mubr.f32.gmra.mrb[0].mxu0 %v411
    %v504 = vpop.f32.mrb[0].mxu0
    %v505 = vadd.f32 %v436, %v504
    %v506 = vpop.f32.mrb[0].mxu0
    %507 = vdwg.mxu0
    %s508 = scalar_lea.vmem [#allocation13], 8
    %509 = vst [vmem:[%s508] sm:$0xff] %v505
    %s510 = scalar_lea.vmem [#allocation7], 16
    %v511 = vld [vmem:[%s510] sm:$0xff]
    %513 = vrot.lane.b32.xlu0 %v511, 32
    %v514 = vpop.permute.xlu0 %513
    %516 = vst.msk [vmem:[#allocation2] sm:$0xff] %vm111, %v514
    %v517 = vld [vmem:[#allocation2] sm:$0xff]
    %v518 = vld [vmem:[#allocation10] sm:$0xff]
    %v519 = vld [vmem:[#allocation10 + $0x8] sm:$0xff]
    %v520 = vld [vmem:[#allocation10 + $0x10] sm:$0xff]
    %v521 = vld [vmem:[#allocation10 + $0x18] sm:$0xff]
    %v522 = vld [vmem:[#allocation10 + $0x20] sm:$0xff]
    %v523 = vld [vmem:[#allocation10 + $0x28] sm:$0xff]
    %v524 = vld [vmem:[#allocation10 + $0x30] sm:$0xff]
    %v525 = vld [vmem:[#allocation10 + $0x38] sm:$0xff]
    %v526 = vld [vmem:[#allocation10 + $0x40] sm:$0xff]
    %v527 = vld [vmem:[#allocation10 + $0x48] sm:$0xff]
    %v528 = vld [vmem:[#allocation10 + $0x50] sm:$0xff]
    %v529 = vld [vmem:[#allocation10 + $0x58] sm:$0xff]
    %v530 = vld [vmem:[#allocation10 + $0x60] sm:$0xff]
    %v531 = vld [vmem:[#allocation10 + $0x68] sm:$0xff]
    %v532 = vld [vmem:[#allocation10 + $0x70] sm:$0xff]
    %v533 = vld [vmem:[#allocation10 + $0x78] sm:$0xff]
    %v534 = vld [vmem:[%s4] sm:$0x1]
    %v536 = vlaneseq
    %v537 = vshrl.u32 %v536, 7
    %v538 = vsub.s32 0, %v537
    %v539 = vrot.slane %v534, %v538
    %541 = vmatprep.subr.mxu0 0.0
    %542 = vmatpush1.msra.mxu0 %v518
    %543 = vmatprep.subr.mxu0 0.0
    %544 = vmatpush1.msra.mxu0 %v519
    %545 = vmatprep.subr.mxu0 0.0
    %546 = vmatpush1.msra.mxu0 %v520
    %547 = vmatprep.subr.mxu0 0.0
    %548 = vmatpush1.msra.mxu0 %v521
    %549 = vmatprep.subr.mxu0 0.0
    %550 = vmatpush1.msra.mxu0 %v522
    %551 = vmatprep.subr.mxu0 0.0
    %552 = vmatpush1.msra.mxu0 %v523
    %553 = vmatprep.subr.mxu0 0.0
    %554 = vmatpush1.msra.mxu0 %v524
    %555 = vmatprep.subr.mxu0 0.0
    %556 = vmatpush1.msra.mxu0 %v525
    %557 = vmatprep.subr.mxu0 0.0
    %558 = vmatpush1.msra.mxu0 %v526
    %559 = vmatprep.subr.mxu0 0.0
    %560 = vmatpush1.msra.mxu0 %v527
    %561 = vmatprep.subr.mxu0 0.0
    %562 = vmatpush1.msra.mxu0 %v528
    %563 = vmatprep.subr.mxu0 0.0
    %564 = vmatpush1.msra.mxu0 %v529
    %565 = vmatprep.subr.mxu0 0.0
    %566 = vmatpush1.msra.mxu0 %v530
    %567 = vmatprep.subr.mxu0 0.0
    %568 = vmatpush1.msra.mxu0 %v531
    %569 = vmatprep.subr.mxu0 0.0
    %570 = vmatpush1.msra.mxu0 %v532
    %571 = vmatprep.subr.mxu0 0.0
    %572 = vmatpush1.msra.mxu0 %v533
    %573 = vmatprep.subr.mxu0 0.0
    %574 = vmatpush1.msra.mxu0 0.0
    %575 = vmatprep.subr.mxu0 0.0
    %576 = vmatpush1.msra.mxu0 0.0
    %577 = vmatprep.subr.mxu0 0.0
    %578 = vmatpush1.msra.mxu0 0.0
    %579 = vmatprep.subr.mxu0 0.0
    %580 = vmatpush1.msra.mxu0 0.0
    %581 = vmatprep.subr.mxu0 0.0
    %582 = vmatpush1.msra.mxu0 0.0
    %583 = vmatprep.subr.mxu0 0.0
    %584 = vmatpush1.msra.mxu0 0.0
    %585 = vmatprep.subr.mxu0 0.0
    %586 = vmatpush1.msra.mxu0 0.0
    %587 = vmatprep.subr.mxu0 0.0
    %588 = vmatpush1.msra.mxu0 0.0
    %589 = vmatprep.subr.mxu0 0.0
    %590 = vmatpush1.msra.mxu0 0.0
    %591 = vmatprep.subr.mxu0 0.0
    %592 = vmatpush1.msra.mxu0 0.0
    %593 = vmatprep.subr.mxu0 0.0
    %594 = vmatpush1.msra.mxu0 0.0
    %595 = vmatprep.subr.mxu0 0.0
    %596 = vmatpush1.msra.mxu0 0.0
    %597 = vmatprep.subr.mxu0 0.0
    %598 = vmatpush1.msra.mxu0 0.0
    %599 = vmatprep.subr.mxu0 0.0
    %600 = vmatpush1.msra.mxu0 0.0
    %601 = vmatprep.subr.mxu0 0.0
    %602 = vmatpush1.msra.mxu0 0.0
    %603 = vmatprep.subr.mxu0 0.0
    %604 = vmatpush1.msra.mxu0 0.0
    %605 = vmatprep.mubr.f32.mxu0 0.0
    %606 = vmatmul.mubr.f32.gmra.mrb[0].mxu0 %v517
    %v607 = vpop.f32.mrb[0].mxu0
    %v608 = vadd.f32 %v539, %v607
    %v609 = vpop.f32.mrb[0].mxu0
    %610 = vdwg.mxu0
    %v611 = vmax.f32 %v608, 0.0
    %v612 = vmul.f32 %v103, %v611
    %v613 = vmul.f32 %v105, %v517
    %v614 = vadd.f32 %v612, %v613
    %615 = vst [vmem:[#allocation2] sm:$0xff] %v614
    %s616 = scalar_lea.vmem [#allocation14], 16
    %617 = vst [vmem:[%s616] sm:$0xff] %v614
    %v618 = vld [vmem:[#allocation11] sm:$0xff]
    %v619 = vld [vmem:[#allocation11 + $0x8] sm:$0xff]
    %v620 = vld [vmem:[#allocation11 + $0x10] sm:$0xff]
    %v621 = vld [vmem:[#allocation11 + $0x18] sm:$0xff]
    %v622 = vld [vmem:[#allocation11 + $0x20] sm:$0xff]
    %v623 = vld [vmem:[#allocation11 + $0x28] sm:$0xff]
    %v624 = vld [vmem:[#allocation11 + $0x30] sm:$0xff]
    %v625 = vld [vmem:[#allocation11 + $0x38] sm:$0xff]
    %v626 = vld [vmem:[#allocation11 + $0x40] sm:$0xff]
    %v627 = vld [vmem:[#allocation11 + $0x48] sm:$0xff]
    %v628 = vld [vmem:[#allocation11 + $0x50] sm:$0xff]
    %v629 = vld [vmem:[#allocation11 + $0x58] sm:$0xff]
    %v630 = vld [vmem:[#allocation11 + $0x60] sm:$0xff]
    %v631 = vld [vmem:[#allocation11 + $0x68] sm:$0xff]
    %v632 = vld [vmem:[#allocation11 + $0x70] sm:$0xff]
    %v633 = vld [vmem:[#allocation11 + $0x78] sm:$0xff]
    %v634 = vld [vmem:[%s6] sm:$0x1]
    %v636 = vlaneseq
    %v637 = vshrl.u32 %v636, 7
    %v638 = vsub.s32 0, %v637
    %v639 = vrot.slane %v634, %v638
    %641 = vmatprep.subr.mxu0 0.0
    %642 = vmatpush1.msra.mxu0 %v618
    %643 = vmatprep.subr.mxu0 0.0
    %644 = vmatpush1.msra.mxu0 %v619
    %645 = vmatprep.subr.mxu0 0.0
    %646 = vmatpush1.msra.mxu0 %v620
    %647 = vmatprep.subr.mxu0 0.0
    %648 = vmatpush1.msra.mxu0 %v621
    %649 = vmatprep.subr.mxu0 0.0
    %650 = vmatpush1.msra.mxu0 %v622
    %651 = vmatprep.subr.mxu0 0.0
    %652 = vmatpush1.msra.mxu0 %v623
    %653 = vmatprep.subr.mxu0 0.0
    %654 = vmatpush1.msra.mxu0 %v624
    %655 = vmatprep.subr.mxu0 0.0
    %656 = vmatpush1.msra.mxu0 %v625
    %657 = vmatprep.subr.mxu0 0.0
    %658 = vmatpush1.msra.mxu0 %v626
    %659 = vmatprep.subr.mxu0 0.0
    %660 = vmatpush1.msra.mxu0 %v627
    %661 = vmatprep.subr.mxu0 0.0
    %662 = vmatpush1.msra.mxu0 %v628
    %663 = vmatprep.subr.mxu0 0.0
    %664 = vmatpush1.msra.mxu0 %v629
    %665 = vmatprep.subr.mxu0 0.0
    %666 = vmatpush1.msra.mxu0 %v630
    %667 = vmatprep.subr.mxu0 0.0
    %668 = vmatpush1.msra.mxu0 %v631
    %669 = vmatprep.subr.mxu0 0.0
    %670 = vmatpush1.msra.mxu0 %v632
    %671 = vmatprep.subr.mxu0 0.0
    %672 = vmatpush1.msra.mxu0 %v633
    %673 = vmatprep.subr.mxu0 0.0
    %674 = vmatpush1.msra.mxu0 0.0
    %675 = vmatprep.subr.mxu0 0.0
    %676 = vmatpush1.msra.mxu0 0.0
    %677 = vmatprep.subr.mxu0 0.0
    %678 = vmatpush1.msra.mxu0 0.0
    %679 = vmatprep.subr.mxu0 0.0
    %680 = vmatpush1.msra.mxu0 0.0
    %681 = vmatprep.subr.mxu0 0.0
    %682 = vmatpush1.msra.mxu0 0.0
    %683 = vmatprep.subr.mxu0 0.0
    %684 = vmatpush1.msra.mxu0 0.0
    %685 = vmatprep.subr.mxu0 0.0
    %686 = vmatpush1.msra.mxu0 0.0
    %687 = vmatprep.subr.mxu0 0.0
    %688 = vmatpush1.msra.mxu0 0.0
    %689 = vmatprep.subr.mxu0 0.0
    %690 = vmatpush1.msra.mxu0 0.0
    %691 = vmatprep.subr.mxu0 0.0
    %692 = vmatpush1.msra.mxu0 0.0
    %693 = vmatprep.subr.mxu0 0.0
    %694 = vmatpush1.msra.mxu0 0.0
    %695 = vmatprep.subr.mxu0 0.0
    %696 = vmatpush1.msra.mxu0 0.0
    %697 = vmatprep.subr.mxu0 0.0
    %698 = vmatpush1.msra.mxu0 0.0
    %699 = vmatprep.subr.mxu0 0.0
    %700 = vmatpush1.msra.mxu0 0.0
    %701 = vmatprep.subr.mxu0 0.0
    %702 = vmatpush1.msra.mxu0 0.0
    %703 = vmatprep.subr.mxu0 0.0
    %704 = vmatpush1.msra.mxu0 0.0
    %705 = vmatprep.mubr.f32.mxu0 0.0
    %706 = vmatmul.mubr.f32.gmra.mrb[0].mxu0 %v614
    %v707 = vpop.f32.mrb[0].mxu0
    %v708 = vadd.f32 %v639, %v707
    %v709 = vpop.f32.mrb[0].mxu0
    %710 = vdwg.mxu0
    %s711 = scalar_lea.vmem [#allocation13], 16
    %712 = vst [vmem:[%s711] sm:$0xff] %v708
    %s713 = scalar_lea.vmem [#allocation7], 24
    %v714 = vld [vmem:[%s713] sm:$0xff]
    %716 = vrot.lane.b32.xlu0 %v714, 32
    %v717 = vpop.permute.xlu0 %716
    %719 = vst.msk [vmem:[#allocation2] sm:$0xff] %vm111, %v717
    %v720 = vld [vmem:[#allocation2] sm:$0xff]
    %v721 = vld [vmem:[#allocation10] sm:$0xff]
    %v722 = vld [vmem:[#allocation10 + $0x8] sm:$0xff]
    %v723 = vld [vmem:[#allocation10 + $0x10] sm:$0xff]
    %v724 = vld [vmem:[#allocation10 + $0x18] sm:$0xff]
    %v725 = vld [vmem:[#allocation10 + $0x20] sm:$0xff]
    %v726 = vld [vmem:[#allocation10 + $0x28] sm:$0xff]
    %v727 = vld [vmem:[#allocation10 + $0x30] sm:$0xff]
    %v728 = vld [vmem:[#allocation10 + $0x38] sm:$0xff]
    %v729 = vld [vmem:[#allocation10 + $0x40] sm:$0xff]
    %v730 = vld [vmem:[#allocation10 + $0x48] sm:$0xff]
    %v731 = vld [vmem:[#allocation10 + $0x50] sm:$0xff]
    %v732 = vld [vmem:[#allocation10 + $0x58] sm:$0xff]
    %v733 = vld [vmem:[#allocation10 + $0x60] sm:$0xff]
    %v734 = vld [vmem:[#allocation10 + $0x68] sm:$0xff]
    %v735 = vld [vmem:[#allocation10 + $0x70] sm:$0xff]
    %v736 = vld [vmem:[#allocation10 + $0x78] sm:$0xff]
    %v737 = vld [vmem:[%s4] sm:$0x1]
    %v739 = vlaneseq
    %v740 = vshrl.u32 %v739, 7
    %v741 = vsub.s32 0, %v740
    %v742 = vrot.slane %v737, %v741
    %744 = vmatprep.subr.mxu0 0.0
    %745 = vmatpush1.msra.mxu0 %v721
    %746 = vmatprep.subr.mxu0 0.0
    %747 = vmatpush1.msra.mxu0 %v722
    %748 = vmatprep.subr.mxu0 0.0
    %749 = vmatpush1.msra.mxu0 %v723
    %750 = vmatprep.subr.mxu0 0.0
    %751 = vmatpush1.msra.mxu0 %v724
    %752 = vmatprep.subr.mxu0 0.0
    %753 = vmatpush1.msra.mxu0 %v725
    %754 = vmatprep.subr.mxu0 0.0
    %755 = vmatpush1.msra.mxu0 %v726
    %756 = vmatprep.subr.mxu0 0.0
    %757 = vmatpush1.msra.mxu0 %v727
    %758 = vmatprep.subr.mxu0 0.0
    %759 = vmatpush1.msra.mxu0 %v728
    %760 = vmatprep.subr.mxu0 0.0
    %761 = vmatpush1.msra.mxu0 %v729
    %762 = vmatprep.subr.mxu0 0.0
    %763 = vmatpush1.msra.mxu0 %v730
    %764 = vmatprep.subr.mxu0 0.0
    %765 = vmatpush1.msra.mxu0 %v731
    %766 = vmatprep.subr.mxu0 0.0
    %767 = vmatpush1.msra.mxu0 %v732
    %768 = vmatprep.subr.mxu0 0.0
    %769 = vmatpush1.msra.mxu0 %v733
    %770 = vmatprep.subr.mxu0 0.0
    %771 = vmatpush1.msra.mxu0 %v734
    %772 = vmatprep.subr.mxu0 0.0
    %773 = vmatpush1.msra.mxu0 %v735
    %774 = vmatprep.subr.mxu0 0.0
    %775 = vmatpush1.msra.mxu0 %v736
    %776 = vmatprep.subr.mxu0 0.0
    %777 = vmatpush1.msra.mxu0 0.0
    %778 = vmatprep.subr.mxu0 0.0
    %779 = vmatpush1.msra.mxu0 0.0
    %780 = vmatprep.subr.mxu0 0.0
    %781 = vmatpush1.msra.mxu0 0.0
    %782 = vmatprep.subr.mxu0 0.0
    %783 = vmatpush1.msra.mxu0 0.0
    %784 = vmatprep.subr.mxu0 0.0
    %785 = vmatpush1.msra.mxu0 0.0
    %786 = vmatprep.subr.mxu0 0.0
    %787 = vmatpush1.msra.mxu0 0.0
    %788 = vmatprep.subr.mxu0 0.0
    %789 = vmatpush1.msra.mxu0 0.0
    %790 = vmatprep.subr.mxu0 0.0
    %791 = vmatpush1.msra.mxu0 0.0
    %792 = vmatprep.subr.mxu0 0.0
    %793 = vmatpush1.msra.mxu0 0.0
    %794 = vmatprep.subr.mxu0 0.0
    %795 = vmatpush1.msra.mxu0 0.0
    %796 = vmatprep.subr.mxu0 0.0
    %797 = vmatpush1.msra.mxu0 0.0
    %798 = vmatprep.subr.mxu0 0.0
    %799 = vmatpush1.msra.mxu0 0.0
    %800 = vmatprep.subr.mxu0 0.0
    %801 = vmatpush1.msra.mxu0 0.0
    %802 = vmatprep.subr.mxu0 0.0
    %803 = vmatpush1.msra.mxu0 0.0
    %804 = vmatprep.subr.mxu0 0.0
    %805 = vmatpush1.msra.mxu0 0.0
    %806 = vmatprep.subr.mxu0 0.0
    %807 = vmatpush1.msra.mxu0 0.0
    %808 = vmatprep.mubr.f32.mxu0 0.0
    %809 = vmatmul.mubr.f32.gmra.mrb[0].mxu0 %v720
    %v810 = vpop.f32.mrb[0].mxu0
    %v811 = vadd.f32 %v742, %v810
    %v812 = vpop.f32.mrb[0].mxu0
    %813 = vdwg.mxu0
    %v814 = vmax.f32 %v811, 0.0
    %v815 = vmul.f32 %v103, %v814
    %v816 = vmul.f32 %v105, %v720
    %v817 = vadd.f32 %v815, %v816
    %818 = vst [vmem:[#allocation2] sm:$0xff] %v817
    %s819 = scalar_lea.vmem [#allocation14], 24
    %820 = vst [vmem:[%s819] sm:$0xff] %v817
    %v821 = vld [vmem:[#allocation11] sm:$0xff]
    %v822 = vld [vmem:[#allocation11 + $0x8] sm:$0xff]
    %v823 = vld [vmem:[#allocation11 + $0x10] sm:$0xff]
    %v824 = vld [vmem:[#allocation11 + $0x18] sm:$0xff]
    %v825 = vld [vmem:[#allocation11 + $0x20] sm:$0xff]
    %v826 = vld [vmem:[#allocation11 + $0x28] sm:$0xff]
    %v827 = vld [vmem:[#allocation11 + $0x30] sm:$0xff]
    %v828 = vld [vmem:[#allocation11 + $0x38] sm:$0xff]
    %v829 = vld [vmem:[#allocation11 + $0x40] sm:$0xff]
    %v830 = vld [vmem:[#allocation11 + $0x48] sm:$0xff]
    %v831 = vld [vmem:[#allocation11 + $0x50] sm:$0xff]
    %v832 = vld [vmem:[#allocation11 + $0x58] sm:$0xff]
    %v833 = vld [vmem:[#allocation11 + $0x60] sm:$0xff]
    %v834 = vld [vmem:[#allocation11 + $0x68] sm:$0xff]
    %v835 = vld [vmem:[#allocation11 + $0x70] sm:$0xff]
    %v836 = vld [vmem:[#allocation11 + $0x78] sm:$0xff]
    %v837 = vld [vmem:[%s6] sm:$0x1]
    %v839 = vlaneseq
    %v840 = vshrl.u32 %v839, 7
    %v841 = vsub.s32 0, %v840
    %v842 = vrot.slane %v837, %v841
    %844 = vmatprep.subr.mxu0 0.0
    %845 = vmatpush1.msra.mxu0 %v821
    %846 = vmatprep.subr.mxu0 0.0
    %847 = vmatpush1.msra.mxu0 %v822
    %848 = vmatprep.subr.mxu0 0.0
    %849 = vmatpush1.msra.mxu0 %v823
    %850 = vmatprep.subr.mxu0 0.0
    %851 = vmatpush1.msra.mxu0 %v824
    %852 = vmatprep.subr.mxu0 0.0
    %853 = vmatpush1.msra.mxu0 %v825
    %854 = vmatprep.subr.mxu0 0.0
    %855 = vmatpush1.msra.mxu0 %v826
    %856 = vmatprep.subr.mxu0 0.0
    %857 = vmatpush1.msra.mxu0 %v827
    %858 = vmatprep.subr.mxu0 0.0
    %859 = vmatpush1.msra.mxu0 %v828
    %860 = vmatprep.subr.mxu0 0.0
    %861 = vmatpush1.msra.mxu0 %v829
    %862 = vmatprep.subr.mxu0 0.0
    %863 = vmatpush1.msra.mxu0 %v830
    %864 = vmatprep.subr.mxu0 0.0
    %865 = vmatpush1.msra.mxu0 %v831
    %866 = vmatprep.subr.mxu0 0.0
    %867 = vmatpush1.msra.mxu0 %v832
    %868 = vmatprep.subr.mxu0 0.0
    %869 = vmatpush1.msra.mxu0 %v833
    %870 = vmatprep.subr.mxu0 0.0
    %871 = vmatpush1.msra.mxu0 %v834
    %872 = vmatprep.subr.mxu0 0.0
    %873 = vmatpush1.msra.mxu0 %v835
    %874 = vmatprep.subr.mxu0 0.0
    %875 = vmatpush1.msra.mxu0 %v836
    %876 = vmatprep.subr.mxu0 0.0
    %877 = vmatpush1.msra.mxu0 0.0
    %878 = vmatprep.subr.mxu0 0.0
    %879 = vmatpush1.msra.mxu0 0.0
    %880 = vmatprep.subr.mxu0 0.0
    %881 = vmatpush1.msra.mxu0 0.0
    %882 = vmatprep.subr.mxu0 0.0
    %883 = vmatpush1.msra.mxu0 0.0
    %884 = vmatprep.subr.mxu0 0.0
    %885 = vmatpush1.msra.mxu0 0.0
    %886 = vmatprep.subr.mxu0 0.0
    %887 = vmatpush1.msra.mxu0 0.0
    %888 = vmatprep.subr.mxu0 0.0
    %889 = vmatpush1.msra.mxu0 0.0
    %890 = vmatprep.subr.mxu0 0.0
    %891 = vmatpush1.msra.mxu0 0.0
    %892 = vmatprep.subr.mxu0 0.0
    %893 = vmatpush1.msra.mxu0 0.0
    %894 = vmatprep.subr.mxu0 0.0
    %895 = vmatpush1.msra.mxu0 0.0
    %896 = vmatprep.subr.mxu0 0.0
    %897 = vmatpush1.msra.mxu0 0.0
    %898 = vmatprep.subr.mxu0 0.0
    %899 = vmatpush1.msra.mxu0 0.0
    %900 = vmatprep.subr.mxu0 0.0
    %901 = vmatpush1.msra.mxu0 0.0
    %902 = vmatprep.subr.mxu0 0.0
    %903 = vmatpush1.msra.mxu0 0.0
    %904 = vmatprep.subr.mxu0 0.0
    %905 = vmatpush1.msra.mxu0 0.0
    %906 = vmatprep.subr.mxu0 0.0
    %907 = vmatpush1.msra.mxu0 0.0
    %908 = vmatprep.mubr.f32.mxu0 0.0
    %909 = vmatmul.mubr.f32.gmra.mrb[0].mxu0 %v817
    %v910 = vpop.f32.mrb[0].mxu0
    %v911 = vadd.f32 %v842, %v910
    %v912 = vpop.f32.mrb[0].mxu0
    %913 = vdwg.mxu0
    %s914 = scalar_lea.vmem [#allocation13], 24
    %915 = vst [vmem:[%s914] sm:$0xff] %v911
    %s916 = scalar_lea.vmem [#allocation7], 32
    %v917 = vld [vmem:[%s916] sm:$0xff]
    %919 = vrot.lane.b32.xlu0 %v917, 32
    %v920 = vpop.permute.xlu0 %919
    %922 = vst.msk [vmem:[#allocation2] sm:$0xff] %vm111, %v920
    %v923 = vld [vmem:[#allocation2] sm:$0xff]
    %v924 = vld [vmem:[#allocation10] sm:$0xff]
    %v925 = vld [vmem:[#allocation10 + $0x8] sm:$0xff]
    %v926 = vld [vmem:[#allocation10 + $0x10] sm:$0xff]
    %v927 = vld [vmem:[#allocation10 + $0x18] sm:$0xff]
    %v928 = vld [vmem:[#allocation10 + $0x20] sm:$0xff]
    %v929 = vld [vmem:[#allocation10 + $0x28] sm:$0xff]
    %v930 = vld [vmem:[#allocation10 + $0x30] sm:$0xff]
    %v931 = vld [vmem:[#allocation10 + $0x38] sm:$0xff]
    %v932 = vld [vmem:[#allocation10 + $0x40] sm:$0xff]
    %v933 = vld [vmem:[#allocation10 + $0x48] sm:$0xff]
    %v934 = vld [vmem:[#allocation10 + $0x50] sm:$0xff]
    %v935 = vld [vmem:[#allocation10 + $0x58] sm:$0xff]
    %v936 = vld [vmem:[#allocation10 + $0x60] sm:$0xff]
    %v937 = vld [vmem:[#allocation10 + $0x68] sm:$0xff]
    %v938 = vld [vmem:[#allocation10 + $0x70] sm:$0xff]
    %v939 = vld [vmem:[#allocation10 + $0x78] sm:$0xff]
    %v940 = vld [vmem:[%s4] sm:$0x1]
    %v942 = vlaneseq
    %v943 = vshrl.u32 %v942, 7
    %v944 = vsub.s32 0, %v943
    %v945 = vrot.slane %v940, %v944
    %947 = vmatprep.subr.mxu0 0.0
    %948 = vmatpush1.msra.mxu0 %v924
    %949 = vmatprep.subr.mxu0 0.0
    %950 = vmatpush1.msra.mxu0 %v925
    %951 = vmatprep.subr.mxu0 0.0
    %952 = vmatpush1.msra.mxu0 %v926
    %953 = vmatprep.subr.mxu0 0.0
    %954 = vmatpush1.msra.mxu0 %v927
    %955 = vmatprep.subr.mxu0 0.0
    %956 = vmatpush1.msra.mxu0 %v928
    %957 = vmatprep.subr.mxu0 0.0
    %958 = vmatpush1.msra.mxu0 %v929
    %959 = vmatprep.subr.mxu0 0.0
    %960 = vmatpush1.msra.mxu0 %v930
    %961 = vmatprep.subr.mxu0 0.0
    %962 = vmatpush1.msra.mxu0 %v931
    %963 = vmatprep.subr.mxu0 0.0
    %964 = vmatpush1.msra.mxu0 %v932
    %965 = vmatprep.subr.mxu0 0.0
    %966 = vmatpush1.msra.mxu0 %v933
    %967 = vmatprep.subr.mxu0 0.0
    %968 = vmatpush1.msra.mxu0 %v934
    %969 = vmatprep.subr.mxu0 0.0
    %970 = vmatpush1.msra.mxu0 %v935
    %971 = vmatprep.subr.mxu0 0.0
    %972 = vmatpush1.msra.mxu0 %v936
    %973 = vmatprep.subr.mxu0 0.0
    %974 = vmatpush1.msra.mxu0 %v937
    %975 = vmatprep.subr.mxu0 0.0
    %976 = vmatpush1.msra.mxu0 %v938
    %977 = vmatprep.subr.mxu0 0.0
    %978 = vmatpush1.msra.mxu0 %v939
    %979 = vmatprep.subr.mxu0 0.0
    %980 = vmatpush1.msra.mxu0 0.0
    %981 = vmatprep.subr.mxu0 0.0
    %982 = vmatpush1.msra.mxu0 0.0
    %983 = vmatprep.subr.mxu0 0.0
    %984 = vmatpush1.msra.mxu0 0.0
    %985 = vmatprep.subr.mxu0 0.0
    %986 = vmatpush1.msra.mxu0 0.0
    %987 = vmatprep.subr.mxu0 0.0
    %988 = vmatpush1.msra.mxu0 0.0
    %989 = vmatprep.subr.mxu0 0.0
    %990 = vmatpush1.msra.mxu0 0.0
    %991 = vmatprep.subr.mxu0 0.0
    %992 = vmatpush1.msra.mxu0 0.0
    %993 = vmatprep.subr.mxu0 0.0
    %994 = vmatpush1.msra.mxu0 0.0
    %995 = vmatprep.subr.mxu0 0.0
    %996 = vmatpush1.msra.mxu0 0.0
    %997 = vmatprep.subr.mxu0 0.0
    %998 = vmatpush1.msra.mxu0 0.0
    %999 = vmatprep.subr.mxu0 0.0
    %1000 = vmatpush1.msra.mxu0 0.0
    %1001 = vmatprep.subr.mxu0 0.0
    %1002 = vmatpush1.msra.mxu0 0.0
    %1003 = vmatprep.subr.mxu0 0.0
    %1004 = vmatpush1.msra.mxu0 0.0
    %1005 = vmatprep.subr.mxu0 0.0
    %1006 = vmatpush1.msra.mxu0 0.0
    %1007 = vmatprep.subr.mxu0 0.0
    %1008 = vmatpush1.msra.mxu0 0.0
    %1009 = vmatprep.subr.mxu0 0.0
    %1010 = vmatpush1.msra.mxu0 0.0
    %1011 = vmatprep.mubr.f32.mxu0 0.0
    %1012 = vmatmul.mubr.f32.gmra.mrb[0].mxu0 %v923
    %v1013 = vpop.f32.mrb[0].mxu0
    %v1014 = vadd.f32 %v945, %v1013
    %v1015 = vpop.f32.mrb[0].mxu0
    %1016 = vdwg.mxu0
    %v1017 = vmax.f32 %v1014, 0.0
    %v1018 = vmul.f32 %v103, %v1017
    %v1019 = vmul.f32 %v105, %v923
    %v1020 = vadd.f32 %v1018, %v1019
    %1021 = vst [vmem:[#allocation2] sm:$0xff] %v1020
    %s1022 = scalar_lea.vmem [#allocation14], 32
    %1023 = vst [vmem:[%s1022] sm:$0xff] %v1020
    %v1024 = vld [vmem:[#allocation11] sm:$0xff]
    %v1025 = vld [vmem:[#allocation11 + $0x8] sm:$0xff]
    %v1026 = vld [vmem:[#allocation11 + $0x10] sm:$0xff]
    %v1027 = vld [vmem:[#allocation11 + $0x18] sm:$0xff]
    %v1028 = vld [vmem:[#allocation11 + $0x20] sm:$0xff]
    %v1029 = vld [vmem:[#allocation11 + $0x28] sm:$0xff]
    %v1030 = vld [vmem:[#allocation11 + $0x30] sm:$0xff]
    %v1031 = vld [vmem:[#allocation11 + $0x38] sm:$0xff]
    %v1032 = vld [vmem:[#allocation11 + $0x40] sm:$0xff]
    %v1033 = vld [vmem:[#allocation11 + $0x48] sm:$0xff]
    %v1034 = vld [vmem:[#allocation11 + $0x50] sm:$0xff]
    %v1035 = vld [vmem:[#allocation11 + $0x58] sm:$0xff]
    %v1036 = vld [vmem:[#allocation11 + $0x60] sm:$0xff]
    %v1037 = vld [vmem:[#allocation11 + $0x68] sm:$0xff]
    %v1038 = vld [vmem:[#allocation11 + $0x70] sm:$0xff]
    %v1039 = vld [vmem:[#allocation11 + $0x78] sm:$0xff]
    %v1040 = vld [vmem:[%s6] sm:$0x1]
    %v1042 = vlaneseq
    %v1043 = vshrl.u32 %v1042, 7
    %v1044 = vsub.s32 0, %v1043
    %v1045 = vrot.slane %v1040, %v1044
    %1047 = vmatprep.subr.mxu0 0.0
    %1048 = vmatpush1.msra.mxu0 %v1024
    %1049 = vmatprep.subr.mxu0 0.0
    %1050 = vmatpush1.msra.mxu0 %v1025
    %1051 = vmatprep.subr.mxu0 0.0
    %1052 = vmatpush1.msra.mxu0 %v1026
    %1053 = vmatprep.subr.mxu0 0.0
    %1054 = vmatpush1.msra.mxu0 %v1027
    %1055 = vmatprep.subr.mxu0 0.0
    %1056 = vmatpush1.msra.mxu0 %v1028
    %1057 = vmatprep.subr.mxu0 0.0
    %1058 = vmatpush1.msra.mxu0 %v1029
    %1059 = vmatprep.subr.mxu0 0.0
    %1060 = vmatpush1.msra.mxu0 %v1030
    %1061 = vmatprep.subr.mxu0 0.0
    %1062 = vmatpush1.msra.mxu0 %v1031
    %1063 = vmatprep.subr.mxu0 0.0
    %1064 = vmatpush1.msra.mxu0 %v1032
    %1065 = vmatprep.subr.mxu0 0.0
    %1066 = vmatpush1.msra.mxu0 %v1033
    %1067 = vmatprep.subr.mxu0 0.0
    %1068 = vmatpush1.msra.mxu0 %v1034
    %1069 = vmatprep.subr.mxu0 0.0
    %1070 = vmatpush1.msra.mxu0 %v1035
    %1071 = vmatprep.subr.mxu0 0.0
    %1072 = vmatpush1.msra.mxu0 %v1036
    %1073 = vmatprep.subr.mxu0 0.0
    %1074 = vmatpush1.msra.mxu0 %v1037
    %1075 = vmatprep.subr.mxu0 0.0
    %1076 = vmatpush1.msra.mxu0 %v1038
    %1077 = vmatprep.subr.mxu0 0.0
    %1078 = vmatpush1.msra.mxu0 %v1039
    %1079 = vmatprep.subr.mxu0 0.0
    %1080 = vmatpush1.msra.mxu0 0.0
    %1081 = vmatprep.subr.mxu0 0.0
    %1082 = vmatpush1.msra.mxu0 0.0
    %1083 = vmatprep.subr.mxu0 0.0
    %1084 = vmatpush1.msra.mxu0 0.0
    %1085 = vmatprep.subr.mxu0 0.0
    %1086 = vmatpush1.msra.mxu0 0.0
    %1087 = vmatprep.subr.mxu0 0.0
    %1088 = vmatpush1.msra.mxu0 0.0
    %1089 = vmatprep.subr.mxu0 0.0
    %1090 = vmatpush1.msra.mxu0 0.0
    %1091 = vmatprep.subr.mxu0 0.0
    %1092 = vmatpush1.msra.mxu0 0.0
    %1093 = vmatprep.subr.mxu0 0.0
    %1094 = vmatpush1.msra.mxu0 0.0
    %1095 = vmatprep.subr.mxu0 0.0
    %1096 = vmatpush1.msra.mxu0 0.0
    %1097 = vmatprep.subr.mxu0 0.0
    %1098 = vmatpush1.msra.mxu0 0.0
    %1099 = vmatprep.subr.mxu0 0.0
    %1100 = vmatpush1.msra.mxu0 0.0
    %1101 = vmatprep.subr.mxu0 0.0
    %1102 = vmatpush1.msra.mxu0 0.0
    %1103 = vmatprep.subr.mxu0 0.0
    %1104 = vmatpush1.msra.mxu0 0.0
    %1105 = vmatprep.subr.mxu0 0.0
    %1106 = vmatpush1.msra.mxu0 0.0
    %1107 = vmatprep.subr.mxu0 0.0
    %1108 = vmatpush1.msra.mxu0 0.0
    %1109 = vmatprep.subr.mxu0 0.0
    %1110 = vmatpush1.msra.mxu0 0.0
    %1111 = vmatprep.mubr.f32.mxu0 0.0
    %1112 = vmatmul.mubr.f32.gmra.mrb[0].mxu0 %v1020
    %v1113 = vpop.f32.mrb[0].mxu0
    %v1114 = vadd.f32 %v1045, %v1113
    %v1115 = vpop.f32.mrb[0].mxu0
    %1116 = vdwg.mxu0
    %s1117 = scalar_lea.vmem [#allocation13], 32
    %1118 = vst [vmem:[%s1117] sm:$0xff] %v1114
    %s1119 = scalar_lea.vmem [#allocation7], 40
    %v1120 = vld [vmem:[%s1119] sm:$0xff]
    %1122 = vrot.lane.b32.xlu0 %v1120, 32
    %v1123 = vpop.permute.xlu0 %1122
    %1125 = vst.msk [vmem:[#allocation2] sm:$0xff] %vm111, %v1123
    %v1126 = vld [vmem:[#allocation2] sm:$0xff]
    %v1127 = vld [vmem:[#allocation10] sm:$0xff]
    %v1128 = vld [vmem:[#allocation10 + $0x8] sm:$0xff]
    %v1129 = vld [vmem:[#allocation10 + $0x10] sm:$0xff]
    %v1130 = vld [vmem:[#allocation10 + $0x18] sm:$0xff]
    %v1131 = vld [vmem:[#allocation10 + $0x20] sm:$0xff]
    %v1132 = vld [vmem:[#allocation10 + $0x28] sm:$0xff]
    %v1133 = vld [vmem:[#allocation10 + $0x30] sm:$0xff]
    %v1134 = vld [vmem:[#allocation10 + $0x38] sm:$0xff]
    %v1135 = vld [vmem:[#allocation10 + $0x40] sm:$0xff]
    %v1136 = vld [vmem:[#allocation10 + $0x48] sm:$0xff]
    %v1137 = vld [vmem:[#allocation10 + $0x50] sm:$0xff]
    %v1138 = vld [vmem:[#allocation10 + $0x58] sm:$0xff]
    %v1139 = vld [vmem:[#allocation10 + $0x60] sm:$0xff]
    %v1140 = vld [vmem:[#allocation10 + $0x68] sm:$0xff]
    %v1141 = vld [vmem:[#allocation10 + $0x70] sm:$0xff]
    %v1142 = vld [vmem:[#allocation10 + $0x78] sm:$0xff]
    %v1143 = vld [vmem:[%s4] sm:$0x1]
    %v1145 = vlaneseq
    %v1146 = vshrl.u32 %v1145, 7
    %v1147 = vsub.s32 0, %v1146
    %v1148 = vrot.slane %v1143, %v1147
    %1150 = vmatprep.subr.mxu0 0.0
    %1151 = vmatpush1.msra.mxu0 %v1127
    %1152 = vmatprep.subr.mxu0 0.0
    %1153 = vmatpush1.msra.mxu0 %v1128
    %1154 = vmatprep.subr.mxu0 0.0
    %1155 = vmatpush1.msra.mxu0 %v1129
    %1156 = vmatprep.subr.mxu0 0.0
    %1157 = vmatpush1.msra.mxu0 %v1130
    %1158 = vmatprep.subr.mxu0 0.0
    %1159 = vmatpush1.msra.mxu0 %v1131
    %1160 = vmatprep.subr.mxu0 0.0
    %1161 = vmatpush1.msra.mxu0 %v1132
    %1162 = vmatprep.subr.mxu0 0.0
    %1163 = vmatpush1.msra.mxu0 %v1133
    %1164 = vmatprep.subr.mxu0 0.0
    %1165 = vmatpush1.msra.mxu0 %v1134
    %1166 = vmatprep.subr.mxu0 0.0
    %1167 = vmatpush1.msra.mxu0 %v1135
    %1168 = vmatprep.subr.mxu0 0.0
    %1169 = vmatpush1.msra.mxu0 %v1136
    %1170 = vmatprep.subr.mxu0 0.0
    %1171 = vmatpush1.msra.mxu0 %v1137
    %1172 = vmatprep.subr.mxu0 0.0
    %1173 = vmatpush1.msra.mxu0 %v1138
    %1174 = vmatprep.subr.mxu0 0.0
    %1175 = vmatpush1.msra.mxu0 %v1139
    %1176 = vmatprep.subr.mxu0 0.0
    %1177 = vmatpush1.msra.mxu0 %v1140
    %1178 = vmatprep.subr.mxu0 0.0
    %1179 = vmatpush1.msra.mxu0 %v1141
    %1180 = vmatprep.subr.mxu0 0.0
    %1181 = vmatpush1.msra.mxu0 %v1142
    %1182 = vmatprep.subr.mxu0 0.0
    %1183 = vmatpush1.msra.mxu0 0.0
    %1184 = vmatprep.subr.mxu0 0.0
    %1185 = vmatpush1.msra.mxu0 0.0
    %1186 = vmatprep.subr.mxu0 0.0
    %1187 = vmatpush1.msra.mxu0 0.0
    %1188 = vmatprep.subr.mxu0 0.0
    %1189 = vmatpush1.msra.mxu0 0.0
    %1190 = vmatprep.subr.mxu0 0.0
    %1191 = vmatpush1.msra.mxu0 0.0
    %1192 = vmatprep.subr.mxu0 0.0
    %1193 = vmatpush1.msra.mxu0 0.0
    %1194 = vmatprep.subr.mxu0 0.0
    %1195 = vmatpush1.msra.mxu0 0.0
    %1196 = vmatprep.subr.mxu0 0.0
    %1197 = vmatpush1.msra.mxu0 0.0
    %1198 = vmatprep.subr.mxu0 0.0
    %1199 = vmatpush1.msra.mxu0 0.0
    %1200 = vmatprep.subr.mxu0 0.0
    %1201 = vmatpush1.msra.mxu0 0.0
    %1202 = vmatprep.subr.mxu0 0.0
    %1203 = vmatpush1.msra.mxu0 0.0
    %1204 = vmatprep.subr.mxu0 0.0
    %1205 = vmatpush1.msra.mxu0 0.0
    %1206 = vmatprep.subr.mxu0 0.0
    %1207 = vmatpush1.msra.mxu0 0.0
    %1208 = vmatprep.subr.mxu0 0.0
    %1209 = vmatpush1.msra.mxu0 0.0
    %1210 = vmatprep.subr.mxu0 0.0
    %1211 = vmatpush1.msra.mxu0 0.0
    %1212 = vmatprep.subr.mxu0 0.0
    %1213 = vmatpush1.msra.mxu0 0.0
    %1214 = vmatprep.mubr.f32.mxu0 0.0
    %1215 = vmatmul.mubr.f32.gmra.mrb[0].mxu0 %v1126
    %v1216 = vpop.f32.mrb[0].mxu0
    %v1217 = vadd.f32 %v1148, %v1216
    %v1218 = vpop.f32.mrb[0].mxu0
    %1219 = vdwg.mxu0
    %v1220 = vmax.f32 %v1217, 0.0
    %v1221 = vmul.f32 %v103, %v1220
    %v1222 = vmul.f32 %v105, %v1126
    %v1223 = vadd.f32 %v1221, %v1222
    %1224 = vst [vmem:[#allocation2] sm:$0xff] %v1223
    %s1225 = scalar_lea.vmem [#allocation14], 40
    %1226 = vst [vmem:[%s1225] sm:$0xff] %v1223
    %v1227 = vld [vmem:[#allocation11] sm:$0xff]
    %v1228 = vld [vmem:[#allocation11 + $0x8] sm:$0xff]
    %v1229 = vld [vmem:[#allocation11 + $0x10] sm:$0xff]
    %v1230 = vld [vmem:[#allocation11 + $0x18] sm:$0xff]
    %v1231 = vld [vmem:[#allocation11 + $0x20] sm:$0xff]
    %v1232 = vld [vmem:[#allocation11 + $0x28] sm:$0xff]
    %v1233 = vld [vmem:[#allocation11 + $0x30] sm:$0xff]
    %v1234 = vld [vmem:[#allocation11 + $0x38] sm:$0xff]
    %v1235 = vld [vmem:[#allocation11 + $0x40] sm:$0xff]
    %v1236 = vld [vmem:[#allocation11 + $0x48] sm:$0xff]
    %v1237 = vld [vmem:[#allocation11 + $0x50] sm:$0xff]
    %v1238 = vld [vmem:[#allocation11 + $0x58] sm:$0xff]
    %v1239 = vld [vmem:[#allocation11 + $0x60] sm:$0xff]
    %v1240 = vld [vmem:[#allocation11 + $0x68] sm:$0xff]
    %v1241 = vld [vmem:[#allocation11 + $0x70] sm:$0xff]
    %v1242 = vld [vmem:[#allocation11 + $0x78] sm:$0xff]
    %v1243 = vld [vmem:[%s6] sm:$0x1]
    %v1245 = vlaneseq
    %v1246 = vshrl.u32 %v1245, 7
    %v1247 = vsub.s32 0, %v1246
    %v1248 = vrot.slane %v1243, %v1247
    %1250 = vmatprep.subr.mxu0 0.0
    %1251 = vmatpush1.msra.mxu0 %v1227
    %1252 = vmatprep.subr.mxu0 0.0
    %1253 = vmatpush1.msra.mxu0 %v1228
    %1254 = vmatprep.subr.mxu0 0.0
    %1255 = vmatpush1.msra.mxu0 %v1229
    %1256 = vmatprep.subr.mxu0 0.0
    %1257 = vmatpush1.msra.mxu0 %v1230
    %1258 = vmatprep.subr.mxu0 0.0
    %1259 = vmatpush1.msra.mxu0 %v1231
    %1260 = vmatprep.subr.mxu0 0.0
    %1261 = vmatpush1.msra.mxu0 %v1232
    %1262 = vmatprep.subr.mxu0 0.0
    %1263 = vmatpush1.msra.mxu0 %v1233
    %1264 = vmatprep.subr.mxu0 0.0
    %1265 = vmatpush1.msra.mxu0 %v1234
    %1266 = vmatprep.subr.mxu0 0.0
    %1267 = vmatpush1.msra.mxu0 %v1235
    %1268 = vmatprep.subr.mxu0 0.0
    %1269 = vmatpush1.msra.mxu0 %v1236
    %1270 = vmatprep.subr.mxu0 0.0
    %1271 = vmatpush1.msra.mxu0 %v1237
    %1272 = vmatprep.subr.mxu0 0.0
    %1273 = vmatpush1.msra.mxu0 %v1238
    %1274 = vmatprep.subr.mxu0 0.0
    %1275 = vmatpush1.msra.mxu0 %v1239
    %1276 = vmatprep.subr.mxu0 0.0
    %1277 = vmatpush1.msra.mxu0 %v1240
    %1278 = vmatprep.subr.mxu0 0.0
    %1279 = vmatpush1.msra.mxu0 %v1241
    %1280 = vmatprep.subr.mxu0 0.0
    %1281 = vmatpush1.msra.mxu0 %v1242
    %1282 = vmatprep.subr.mxu0 0.0
    %1283 = vmatpush1.msra.mxu0 0.0
    %1284 = vmatprep.subr.mxu0 0.0
    %1285 = vmatpush1.msra.mxu0 0.0
    %1286 = vmatprep.subr.mxu0 0.0
    %1287 = vmatpush1.msra.mxu0 0.0
    %1288 = vmatprep.subr.mxu0 0.0
    %1289 = vmatpush1.msra.mxu0 0.0
    %1290 = vmatprep.subr.mxu0 0.0
    %1291 = vmatpush1.msra.mxu0 0.0
    %1292 = vmatprep.subr.mxu0 0.0
    %1293 = vmatpush1.msra.mxu0 0.0
    %1294 = vmatprep.subr.mxu0 0.0
    %1295 = vmatpush1.msra.mxu0 0.0
    %1296 = vmatprep.subr.mxu0 0.0
    %1297 = vmatpush1.msra.mxu0 0.0
    %1298 = vmatprep.subr.mxu0 0.0
    %1299 = vmatpush1.msra.mxu0 0.0
    %1300 = vmatprep.subr.mxu0 0.0
    %1301 = vmatpush1.msra.mxu0 0.0
    %1302 = vmatprep.subr.mxu0 0.0
    %1303 = vmatpush1.msra.mxu0 0.0
    %1304 = vmatprep.subr.mxu0 0.0
    %1305 = vmatpush1.msra.mxu0 0.0
    %1306 = vmatprep.subr.mxu0 0.0
    %1307 = vmatpush1.msra.mxu0 0.0
    %1308 = vmatprep.subr.mxu0 0.0
    %1309 = vmatpush1.msra.mxu0 0.0
    %1310 = vmatprep.subr.mxu0 0.0
    %1311 = vmatpush1.msra.mxu0 0.0
    %1312 = vmatprep.subr.mxu0 0.0
    %1313 = vmatpush1.msra.mxu0 0.0
    %1314 = vmatprep.mubr.f32.mxu0 0.0
    %1315 = vmatmul.mubr.f32.gmra.mrb[0].mxu0 %v1223
    %v1316 = vpop.f32.mrb[0].mxu0
    %v1317 = vadd.f32 %v1248, %v1316
    %v1318 = vpop.f32.mrb[0].mxu0
    %1319 = vdwg.mxu0
    %s1320 = scalar_lea.vmem [#allocation13], 40
    %1321 = vst [vmem:[%s1320] sm:$0xff] %v1317
    %s1322 = scalar_lea.vmem [#allocation7], 48
    %v1323 = vld [vmem:[%s1322] sm:$0xff]
    %1325 = vrot.lane.b32.xlu0 %v1323, 32
    %v1326 = vpop.permute.xlu0 %1325
    %1328 = vst.msk [vmem:[#allocation2] sm:$0xff] %vm111, %v1326
    %v1329 = vld [vmem:[#allocation2] sm:$0xff]
    %v1330 = vld [vmem:[#allocation10] sm:$0xff]
    %v1331 = vld [vmem:[#allocation10 + $0x8] sm:$0xff]
    %v1332 = vld [vmem:[#allocation10 + $0x10] sm:$0xff]
    %v1333 = vld [vmem:[#allocation10 + $0x18] sm:$0xff]
    %v1334 = vld [vmem:[#allocation10 + $0x20] sm:$0xff]
    %v1335 = vld [vmem:[#allocation10 + $0x28] sm:$0xff]
    %v1336 = vld [vmem:[#allocation10 + $0x30] sm:$0xff]
    %v1337 = vld [vmem:[#allocation10 + $0x38] sm:$0xff]
    %v1338 = vld [vmem:[#allocation10 + $0x40] sm:$0xff]
    %v1339 = vld [vmem:[#allocation10 + $0x48] sm:$0xff]
    %v1340 = vld [vmem:[#allocation10 + $0x50] sm:$0xff]
    %v1341 = vld [vmem:[#allocation10 + $0x58] sm:$0xff]
    %v1342 = vld [vmem:[#allocation10 + $0x60] sm:$0xff]
    %v1343 = vld [vmem:[#allocation10 + $0x68] sm:$0xff]
    %v1344 = vld [vmem:[#allocation10 + $0x70] sm:$0xff]
    %v1345 = vld [vmem:[#allocation10 + $0x78] sm:$0xff]
    %v1346 = vld [vmem:[%s4] sm:$0x1]
    %v1348 = vlaneseq
    %v1349 = vshrl.u32 %v1348, 7
    %v1350 = vsub.s32 0, %v1349
    %v1351 = vrot.slane %v1346, %v1350
    %1353 = vmatprep.subr.mxu0 0.0
    %1354 = vmatpush1.msra.mxu0 %v1330
    %1355 = vmatprep.subr.mxu0 0.0
    %1356 = vmatpush1.msra.mxu0 %v1331
    %1357 = vmatprep.subr.mxu0 0.0
    %1358 = vmatpush1.msra.mxu0 %v1332
    %1359 = vmatprep.subr.mxu0 0.0
    %1360 = vmatpush1.msra.mxu0 %v1333
    %1361 = vmatprep.subr.mxu0 0.0
    %1362 = vmatpush1.msra.mxu0 %v1334
    %1363 = vmatprep.subr.mxu0 0.0
    %1364 = vmatpush1.msra.mxu0 %v1335
    %1365 = vmatprep.subr.mxu0 0.0
    %1366 = vmatpush1.msra.mxu0 %v1336
    %1367 = vmatprep.subr.mxu0 0.0
    %1368 = vmatpush1.msra.mxu0 %v1337
    %1369 = vmatprep.subr.mxu0 0.0
    %1370 = vmatpush1.msra.mxu0 %v1338
    %1371 = vmatprep.subr.mxu0 0.0
    %1372 = vmatpush1.msra.mxu0 %v1339
    %1373 = vmatprep.subr.mxu0 0.0
    %1374 = vmatpush1.msra.mxu0 %v1340
    %1375 = vmatprep.subr.mxu0 0.0
    %1376 = vmatpush1.msra.mxu0 %v1341
    %1377 = vmatprep.subr.mxu0 0.0
    %1378 = vmatpush1.msra.mxu0 %v1342
    %1379 = vmatprep.subr.mxu0 0.0
    %1380 = vmatpush1.msra.mxu0 %v1343
    %1381 = vmatprep.subr.mxu0 0.0
    %1382 = vmatpush1.msra.mxu0 %v1344
    %1383 = vmatprep.subr.mxu0 0.0
    %1384 = vmatpush1.msra.mxu0 %v1345
    %1385 = vmatprep.subr.mxu0 0.0
    %1386 = vmatpush1.msra.mxu0 0.0
    %1387 = vmatprep.subr.mxu0 0.0
    %1388 = vmatpush1.msra.mxu0 0.0
    %1389 = vmatprep.subr.mxu0 0.0
    %1390 = vmatpush1.msra.mxu0 0.0
    %1391 = vmatprep.subr.mxu0 0.0
    %1392 = vmatpush1.msra.mxu0 0.0
    %1393 = vmatprep.subr.mxu0 0.0
    %1394 = vmatpush1.msra.mxu0 0.0
    %1395 = vmatprep.subr.mxu0 0.0
    %1396 = vmatpush1.msra.mxu0 0.0
    %1397 = vmatprep.subr.mxu0 0.0
    %1398 = vmatpush1.msra.mxu0 0.0
    %1399 = vmatprep.subr.mxu0 0.0
    %1400 = vmatpush1.msra.mxu0 0.0
    %1401 = vmatprep.subr.mxu0 0.0
    %1402 = vmatpush1.msra.mxu0 0.0
    %1403 = vmatprep.subr.mxu0 0.0
    %1404 = vmatpush1.msra.mxu0 0.0
    %1405 = vmatprep.subr.mxu0 0.0
    %1406 = vmatpush1.msra.mxu0 0.0
    %1407 = vmatprep.subr.mxu0 0.0
    %1408 = vmatpush1.msra.mxu0 0.0
    %1409 = vmatprep.subr.mxu0 0.0
    %1410 = vmatpush1.msra.mxu0 0.0
    %1411 = vmatprep.subr.mxu0 0.0
    %1412 = vmatpush1.msra.mxu0 0.0
    %1413 = vmatprep.subr.mxu0 0.0
    %1414 = vmatpush1.msra.mxu0 0.0
    %1415 = vmatprep.subr.mxu0 0.0
    %1416 = vmatpush1.msra.mxu0 0.0
    %1417 = vmatprep.mubr.f32.mxu0 0.0
    %1418 = vmatmul.mubr.f32.gmra.mrb[0].mxu0 %v1329
    %v1419 = vpop.f32.mrb[0].mxu0
    %v1420 = vadd.f32 %v1351, %v1419
    %v1421 = vpop.f32.mrb[0].mxu0
    %1422 = vdwg.mxu0
    %v1423 = vmax.f32 %v1420, 0.0
    %v1424 = vmul.f32 %v103, %v1423
    %v1425 = vmul.f32 %v105, %v1329
    %v1426 = vadd.f32 %v1424, %v1425
    %1427 = vst [vmem:[#allocation2] sm:$0xff] %v1426
    %s1428 = scalar_lea.vmem [#allocation14], 48
    %1429 = vst [vmem:[%s1428] sm:$0xff] %v1426
    %v1430 = vld [vmem:[#allocation11] sm:$0xff]
    %v1431 = vld [vmem:[#allocation11 + $0x8] sm:$0xff]
    %v1432 = vld [vmem:[#allocation11 + $0x10] sm:$0xff]
    %v1433 = vld [vmem:[#allocation11 + $0x18] sm:$0xff]
    %v1434 = vld [vmem:[#allocation11 + $0x20] sm:$0xff]
    %v1435 = vld [vmem:[#allocation11 + $0x28] sm:$0xff]
    %v1436 = vld [vmem:[#allocation11 + $0x30] sm:$0xff]
    %v1437 = vld [vmem:[#allocation11 + $0x38] sm:$0xff]
    %v1438 = vld [vmem:[#allocation11 + $0x40] sm:$0xff]
    %v1439 = vld [vmem:[#allocation11 + $0x48] sm:$0xff]
    %v1440 = vld [vmem:[#allocation11 + $0x50] sm:$0xff]
    %v1441 = vld [vmem:[#allocation11 + $0x58] sm:$0xff]
    %v1442 = vld [vmem:[#allocation11 + $0x60] sm:$0xff]
    %v1443 = vld [vmem:[#allocation11 + $0x68] sm:$0xff]
    %v1444 = vld [vmem:[#allocation11 + $0x70] sm:$0xff]
    %v1445 = vld [vmem:[#allocation11 + $0x78] sm:$0xff]
    %v1446 = vld [vmem:[%s6] sm:$0x1]
    %v1448 = vlaneseq
    %v1449 = vshrl.u32 %v1448, 7
    %v1450 = vsub.s32 0, %v1449
    %v1451 = vrot.slane %v1446, %v1450
    %1453 = vmatprep.subr.mxu0 0.0
    %1454 = vmatpush1.msra.mxu0 %v1430
    %1455 = vmatprep.subr.mxu0 0.0
    %1456 = vmatpush1.msra.mxu0 %v1431
    %1457 = vmatprep.subr.mxu0 0.0
    %1458 = vmatpush1.msra.mxu0 %v1432
    %1459 = vmatprep.subr.mxu0 0.0
    %1460 = vmatpush1.msra.mxu0 %v1433
    %1461 = vmatprep.subr.mxu0 0.0
    %1462 = vmatpush1.msra.mxu0 %v1434
    %1463 = vmatprep.subr.mxu0 0.0
    %1464 = vmatpush1.msra.mxu0 %v1435
    %1465 = vmatprep.subr.mxu0 0.0
    %1466 = vmatpush1.msra.mxu0 %v1436
    %1467 = vmatprep.subr.mxu0 0.0
    %1468 = vmatpush1.msra.mxu0 %v1437
    %1469 = vmatprep.subr.mxu0 0.0
    %1470 = vmatpush1.msra.mxu0 %v1438
    %1471 = vmatprep.subr.mxu0 0.0
    %1472 = vmatpush1.msra.mxu0 %v1439
    %1473 = vmatprep.subr.mxu0 0.0
    %1474 = vmatpush1.msra.mxu0 %v1440
    %1475 = vmatprep.subr.mxu0 0.0
    %1476 = vmatpush1.msra.mxu0 %v1441
    %1477 = vmatprep.subr.mxu0 0.0
    %1478 = vmatpush1.msra.mxu0 %v1442
    %1479 = vmatprep.subr.mxu0 0.0
    %1480 = vmatpush1.msra.mxu0 %v1443
    %1481 = vmatprep.subr.mxu0 0.0
    %1482 = vmatpush1.msra.mxu0 %v1444
    %1483 = vmatprep.subr.mxu0 0.0
    %1484 = vmatpush1.msra.mxu0 %v1445
    %1485 = vmatprep.subr.mxu0 0.0
    %1486 = vmatpush1.msra.mxu0 0.0
    %1487 = vmatprep.subr.mxu0 0.0
    %1488 = vmatpush1.msra.mxu0 0.0
    %1489 = vmatprep.subr.mxu0 0.0
    %1490 = vmatpush1.msra.mxu0 0.0
    %1491 = vmatprep.subr.mxu0 0.0
    %1492 = vmatpush1.msra.mxu0 0.0
    %1493 = vmatprep.subr.mxu0 0.0
    %1494 = vmatpush1.msra.mxu0 0.0
    %1495 = vmatprep.subr.mxu0 0.0
    %1496 = vmatpush1.msra.mxu0 0.0
    %1497 = vmatprep.subr.mxu0 0.0
    %1498 = vmatpush1.msra.mxu0 0.0
    %1499 = vmatprep.subr.mxu0 0.0
    %1500 = vmatpush1.msra.mxu0 0.0
    %1501 = vmatprep.subr.mxu0 0.0
    %1502 = vmatpush1.msra.mxu0 0.0
    %1503 = vmatprep.subr.mxu0 0.0
    %1504 = vmatpush1.msra.mxu0 0.0
    %1505 = vmatprep.subr.mxu0 0.0
    %1506 = vmatpush1.msra.mxu0 0.0
    %1507 = vmatprep.subr.mxu0 0.0
    %1508 = vmatpush1.msra.mxu0 0.0
    %1509 = vmatprep.subr.mxu0 0.0
    %1510 = vmatpush1.msra.mxu0 0.0
    %1511 = vmatprep.subr.mxu0 0.0
    %1512 = vmatpush1.msra.mxu0 0.0
    %1513 = vmatprep.subr.mxu0 0.0
    %1514 = vmatpush1.msra.mxu0 0.0
    %1515 = vmatprep.subr.mxu0 0.0
    %1516 = vmatpush1.msra.mxu0 0.0
    %1517 = vmatprep.mubr.f32.mxu0 0.0
    %1518 = vmatmul.mubr.f32.gmra.mrb[0].mxu0 %v1426
    %v1519 = vpop.f32.mrb[0].mxu0
    %v1520 = vadd.f32 %v1451, %v1519
    %v1521 = vpop.f32.mrb[0].mxu0
    %1522 = vdwg.mxu0
    %s1523 = scalar_lea.vmem [#allocation13], 48
    %1524 = vst [vmem:[%s1523] sm:$0xff] %v1520
    %s1525 = scalar_lea.vmem [#allocation7], 56
    %v1526 = vld [vmem:[%s1525] sm:$0xff]
    %1528 = vrot.lane.b32.xlu0 %v1526, 32
    %v1529 = vpop.permute.xlu0 %1528
    %1531 = vst.msk [vmem:[#allocation2] sm:$0xff] %vm111, %v1529
    %v1532 = vld [vmem:[#allocation2] sm:$0xff]
    %v1533 = vld [vmem:[#allocation10] sm:$0xff]
    %v1534 = vld [vmem:[#allocation10 + $0x8] sm:$0xff]
    %v1535 = vld [vmem:[#allocation10 + $0x10] sm:$0xff]
    %v1536 = vld [vmem:[#allocation10 + $0x18] sm:$0xff]
    %v1537 = vld [vmem:[#allocation10 + $0x20] sm:$0xff]
    %v1538 = vld [vmem:[#allocation10 + $0x28] sm:$0xff]
    %v1539 = vld [vmem:[#allocation10 + $0x30] sm:$0xff]
    %v1540 = vld [vmem:[#allocation10 + $0x38] sm:$0xff]
    %v1541 = vld [vmem:[#allocation10 + $0x40] sm:$0xff]
    %v1542 = vld [vmem:[#allocation10 + $0x48] sm:$0xff]
    %v1543 = vld [vmem:[#allocation10 + $0x50] sm:$0xff]
    %v1544 = vld [vmem:[#allocation10 + $0x58] sm:$0xff]
    %v1545 = vld [vmem:[#allocation10 + $0x60] sm:$0xff]
    %v1546 = vld [vmem:[#allocation10 + $0x68] sm:$0xff]
    %v1547 = vld [vmem:[#allocation10 + $0x70] sm:$0xff]
    %v1548 = vld [vmem:[#allocation10 + $0x78] sm:$0xff]
    %v1549 = vld [vmem:[%s4] sm:$0x1]
    %v1551 = vlaneseq
    %v1552 = vshrl.u32 %v1551, 7
    %v1553 = vsub.s32 0, %v1552
    %v1554 = vrot.slane %v1549, %v1553
    %1556 = vmatprep.subr.mxu0 0.0
    %1557 = vmatpush1.msra.mxu0 %v1533
    %1558 = vmatprep.subr.mxu0 0.0
    %1559 = vmatpush1.msra.mxu0 %v1534
    %1560 = vmatprep.subr.mxu0 0.0
    %1561 = vmatpush1.msra.mxu0 %v1535
    %1562 = vmatprep.subr.mxu0 0.0
    %1563 = vmatpush1.msra.mxu0 %v1536
    %1564 = vmatprep.subr.mxu0 0.0
    %1565 = vmatpush1.msra.mxu0 %v1537
    %1566 = vmatprep.subr.mxu0 0.0
    %1567 = vmatpush1.msra.mxu0 %v1538
    %1568 = vmatprep.subr.mxu0 0.0
    %1569 = vmatpush1.msra.mxu0 %v1539
    %1570 = vmatprep.subr.mxu0 0.0
    %1571 = vmatpush1.msra.mxu0 %v1540
    %1572 = vmatprep.subr.mxu0 0.0
    %1573 = vmatpush1.msra.mxu0 %v1541
    %1574 = vmatprep.subr.mxu0 0.0
    %1575 = vmatpush1.msra.mxu0 %v1542
    %1576 = vmatprep.subr.mxu0 0.0
    %1577 = vmatpush1.msra.mxu0 %v1543
    %1578 = vmatprep.subr.mxu0 0.0
    %1579 = vmatpush1.msra.mxu0 %v1544
    %1580 = vmatprep.subr.mxu0 0.0
    %1581 = vmatpush1.msra.mxu0 %v1545
    %1582 = vmatprep.subr.mxu0 0.0
    %1583 = vmatpush1.msra.mxu0 %v1546
    %1584 = vmatprep.subr.mxu0 0.0
    %1585 = vmatpush1.msra.mxu0 %v1547
    %1586 = vmatprep.subr.mxu0 0.0
    %1587 = vmatpush1.msra.mxu0 %v1548
    %1588 = vmatprep.subr.mxu0 0.0
    %1589 = vmatpush1.msra.mxu0 0.0
    %1590 = vmatprep.subr.mxu0 0.0
    %1591 = vmatpush1.msra.mxu0 0.0
    %1592 = vmatprep.subr.mxu0 0.0
    %1593 = vmatpush1.msra.mxu0 0.0
    %1594 = vmatprep.subr.mxu0 0.0
    %1595 = vmatpush1.msra.mxu0 0.0
    %1596 = vmatprep.subr.mxu0 0.0
    %1597 = vmatpush1.msra.mxu0 0.0
    %1598 = vmatprep.subr.mxu0 0.0
    %1599 = vmatpush1.msra.mxu0 0.0
    %1600 = vmatprep.subr.mxu0 0.0
    %1601 = vmatpush1.msra.mxu0 0.0
    %1602 = vmatprep.subr.mxu0 0.0
    %1603 = vmatpush1.msra.mxu0 0.0
    %1604 = vmatprep.subr.mxu0 0.0
    %1605 = vmatpush1.msra.mxu0 0.0
    %1606 = vmatprep.subr.mxu0 0.0
    %1607 = vmatpush1.msra.mxu0 0.0
    %1608 = vmatprep.subr.mxu0 0.0
    %1609 = vmatpush1.msra.mxu0 0.0
    %1610 = vmatprep.subr.mxu0 0.0
    %1611 = vmatpush1.msra.mxu0 0.0
    %1612 = vmatprep.subr.mxu0 0.0
    %1613 = vmatpush1.msra.mxu0 0.0
    %1614 = vmatprep.subr.mxu0 0.0
    %1615 = vmatpush1.msra.mxu0 0.0
    %1616 = vmatprep.subr.mxu0 0.0
    %1617 = vmatpush1.msra.mxu0 0.0
    %1618 = vmatprep.subr.mxu0 0.0
    %1619 = vmatpush1.msra.mxu0 0.0
    %1620 = vmatprep.mubr.f32.mxu0 0.0
    %1621 = vmatmul.mubr.f32.gmra.mrb[0].mxu0 %v1532
    %v1622 = vpop.f32.mrb[0].mxu0
    %v1623 = vadd.f32 %v1554, %v1622
    %v1624 = vpop.f32.mrb[0].mxu0
    %1625 = vdwg.mxu0
    %v1626 = vmax.f32 %v1623, 0.0
    %v1627 = vmul.f32 %v103, %v1626
    %v1628 = vmul.f32 %v105, %v1532
    %v1629 = vadd.f32 %v1627, %v1628
    %1630 = vst [vmem:[#allocation2] sm:$0xff] %v1629
    %s1631 = scalar_lea.vmem [#allocation14], 56
    %1632 = vst [vmem:[%s1631] sm:$0xff] %v1629
    %v1633 = vld [vmem:[#allocation11] sm:$0xff]
    %v1634 = vld [vmem:[#allocation11 + $0x8] sm:$0xff]
    %v1635 = vld [vmem:[#allocation11 + $0x10] sm:$0xff]
    %v1636 = vld [vmem:[#allocation11 + $0x18] sm:$0xff]
    %v1637 = vld [vmem:[#allocation11 + $0x20] sm:$0xff]
    %v1638 = vld [vmem:[#allocation11 + $0x28] sm:$0xff]
    %v1639 = vld [vmem:[#allocation11 + $0x30] sm:$0xff]
    %v1640 = vld [vmem:[#allocation11 + $0x38] sm:$0xff]
    %v1641 = vld [vmem:[#allocation11 + $0x40] sm:$0xff]
    %v1642 = vld [vmem:[#allocation11 + $0x48] sm:$0xff]
    %v1643 = vld [vmem:[#allocation11 + $0x50] sm:$0xff]
    %v1644 = vld [vmem:[#allocation11 + $0x58] sm:$0xff]
    %v1645 = vld [vmem:[#allocation11 + $0x60] sm:$0xff]
    %v1646 = vld [vmem:[#allocation11 + $0x68] sm:$0xff]
    %v1647 = vld [vmem:[#allocation11 + $0x70] sm:$0xff]
    %v1648 = vld [vmem:[#allocation11 + $0x78] sm:$0xff]
    %v1649 = vld [vmem:[%s6] sm:$0x1]
    %v1651 = vlaneseq
    %v1652 = vshrl.u32 %v1651, 7
    %v1653 = vsub.s32 0, %v1652
    %v1654 = vrot.slane %v1649, %v1653
    %1656 = vmatprep.subr.mxu0 0.0
    %1657 = vmatpush1.msra.mxu0 %v1633
    %1658 = vmatprep.subr.mxu0 0.0
    %1659 = vmatpush1.msra.mxu0 %v1634
    %1660 = vmatprep.subr.mxu0 0.0
    %1661 = vmatpush1.msra.mxu0 %v1635
    %1662 = vmatprep.subr.mxu0 0.0
    %1663 = vmatpush1.msra.mxu0 %v1636
    %1664 = vmatprep.subr.mxu0 0.0
    %1665 = vmatpush1.msra.mxu0 %v1637
    %1666 = vmatprep.subr.mxu0 0.0
    %1667 = vmatpush1.msra.mxu0 %v1638
    %1668 = vmatprep.subr.mxu0 0.0
    %1669 = vmatpush1.msra.mxu0 %v1639
    %1670 = vmatprep.subr.mxu0 0.0
    %1671 = vmatpush1.msra.mxu0 %v1640
    %1672 = vmatprep.subr.mxu0 0.0
    %1673 = vmatpush1.msra.mxu0 %v1641
    %1674 = vmatprep.subr.mxu0 0.0
    %1675 = vmatpush1.msra.mxu0 %v1642
    %1676 = vmatprep.subr.mxu0 0.0
    %1677 = vmatpush1.msra.mxu0 %v1643
    %1678 = vmatprep.subr.mxu0 0.0
    %1679 = vmatpush1.msra.mxu0 %v1644
    %1680 = vmatprep.subr.mxu0 0.0
    %1681 = vmatpush1.msra.mxu0 %v1645
    %1682 = vmatprep.subr.mxu0 0.0
    %1683 = vmatpush1.msra.mxu0 %v1646
    %1684 = vmatprep.subr.mxu0 0.0
    %1685 = vmatpush1.msra.mxu0 %v1647
    %1686 = vmatprep.subr.mxu0 0.0
    %1687 = vmatpush1.msra.mxu0 %v1648
    %1688 = vmatprep.subr.mxu0 0.0
    %1689 = vmatpush1.msra.mxu0 0.0
    %1690 = vmatprep.subr.mxu0 0.0
    %1691 = vmatpush1.msra.mxu0 0.0
    %1692 = vmatprep.subr.mxu0 0.0
    %1693 = vmatpush1.msra.mxu0 0.0
    %1694 = vmatprep.subr.mxu0 0.0
    %1695 = vmatpush1.msra.mxu0 0.0
    %1696 = vmatprep.subr.mxu0 0.0
    %1697 = vmatpush1.msra.mxu0 0.0
    %1698 = vmatprep.subr.mxu0 0.0
    %1699 = vmatpush1.msra.mxu0 0.0
    %1700 = vmatprep.subr.mxu0 0.0
    %1701 = vmatpush1.msra.mxu0 0.0
    %1702 = vmatprep.subr.mxu0 0.0
    %1703 = vmatpush1.msra.mxu0 0.0
    %1704 = vmatprep.subr.mxu0 0.0
    %1705 = vmatpush1.msra.mxu0 0.0
    %1706 = vmatprep.subr.mxu0 0.0
    %1707 = vmatpush1.msra.mxu0 0.0
    %1708 = vmatprep.subr.mxu0 0.0
    %1709 = vmatpush1.msra.mxu0 0.0
    %1710 = vmatprep.subr.mxu0 0.0
    %1711 = vmatpush1.msra.mxu0 0.0
    %1712 = vmatprep.subr.mxu0 0.0
    %1713 = vmatpush1.msra.mxu0 0.0
    %1714 = vmatprep.subr.mxu0 0.0
    %1715 = vmatpush1.msra.mxu0 0.0
    %1716 = vmatprep.subr.mxu0 0.0
    %1717 = vmatpush1.msra.mxu0 0.0
    %1718 = vmatprep.subr.mxu0 0.0
    %1719 = vmatpush1.msra.mxu0 0.0
    %1720 = vmatprep.mubr.f32.mxu0 0.0
    %1721 = vmatmul.mubr.f32.gmra.mrb[0].mxu0 %v1629
    %v1722 = vpop.f32.mrb[0].mxu0
    %v1723 = vadd.f32 %v1654, %v1722
    %v1724 = vpop.f32.mrb[0].mxu0
    %1725 = vdwg.mxu0
    %s1726 = scalar_lea.vmem [#allocation13], 56
    %1727 = vst [vmem:[%s1726] sm:$0xff] %v1723
    // Predicated region
    $region54: #{tpu_custom_call.1} parent=1 // pred_check
      _
    $region55: #{tpu_custom_call.1} parent=1 // pred_check_branch
      %1729 = sbr.rel (0) target = $region57
    $region56: #{tpu_custom_call.1} parent=1 // pred_region
      %s1731 = ssub.s32 1024, 1024
      %1732 = vsyncadd [#allocation5], %s1731
      %s1733 = sshll.u32 [#allocation13], 4
      %s1734 = int_to_ptr.vmem [resolvable:$true] %s1733
      %1739 = dma.vmem_to_hbm [thread:$0]  %s1734, 1024, %s7, [#allocation5], 128, 128, 8
    $region57: #{tpu_custom_call.1} parent=1 // pred_fallthru
      _
    // Predicated region
    $region58: #{tpu_custom_call.1} parent=1 // pred_check
      _
    $region59: #{tpu_custom_call.1} parent=1 // pred_check_branch
      %1741 = sbr.rel (0) target = $region61
    $region60: #{tpu_custom_call.1} parent=1 // pred_region
      %s1743 = ssub.s32 1024, 1024
      %1744 = vsyncadd [#allocation15], %s1743
      %s1745 = sshll.u32 [#allocation14], 4
      %s1746 = int_to_ptr.vmem [resolvable:$true] %s1745
      %1751 = dma.vmem_to_hbm [thread:$0]  %s1746, 1024, %s8, [#allocation15], 128, 128, 8
    $region61: #{tpu_custom_call.1} parent=1 // pred_fallthru
      _
    // Predicated region
    $region62: #{tpu_custom_call.1} parent=1 // pred_check
      _
    $region63: #{tpu_custom_call.1} parent=1 // pred_check_branch
      %1753 = sbr.rel (0) target = $region65
    $region64: #{tpu_custom_call.1} parent=1 // pred_region
      %1754 = dma.done [#allocation5], 1024
    $region65: #{tpu_custom_call.1} parent=1 // pred_fallthru
      _
    // Predicated region
    $region66: #{tpu_custom_call.1} parent=1 // pred_check
      _
    $region67: #{tpu_custom_call.1} parent=1 // pred_check_branch
      %1756 = sbr.rel (0) target = $region69
    $region68: #{tpu_custom_call.1} parent=1 // pred_region
      %1757 = dma.done [#allocation15], 1024
    $region69: #{tpu_custom_call.1} parent=1 // pred_fallthru
      _
    %1758 = vsyncpa [#allocation4], 1
    %1759 = vsyncpa [#allocation9], 1
    %1760 = vsyncpa [#allocation12], 1
    %1761 = vsyncpa [#allocation5], 1
    %1762 = vsyncpa [#allocation15], 1
    %1763 = vsyncpa [#allocation6], 1

</llo_original>
